<compile_context>
chip_gen: v7x
topology: tpu7x:2x2x1
jax: 0.10.0
libtpu: 0.0.40
codegen_flags: <defaults>
</compile_context>

<pallas_src>
import jax
import jax.numpy as jnp
from jax.experimental import pallas as pl
from jax.experimental.pallas import tpu as pltpu

# Logical / padded feature dims.  Only the *internal* dims are padded (exact:
# padded weight rows/cols are zero, ReLU(0)=0 contributes nothing); the HBM
# input (100) and HBM output (784) stay unpadded.
D_IN, D_IN_PAD = 100, 128
D_H1, D_H1_PAD = 64, 128
D_H2 = 128
D_H3 = 256
D_OUT, D_OUT_PAD = 784, 896   # 7 * 128 (in-kernel only)

MAX_TILE_B = 1024   # keeps double-buffered blocks + intermediates << 64 MiB (v7x)


def _round_up(n, m):
    return ((n + m - 1) // m) * m


def generator_kernel(x_ref,
                     w1_ref, b1_ref,
                     w2_ref, b2_ref,
                     w3_ref, b3_ref,
                     w4_ref, b4_ref,
                     o_ref,
                     xpad_ref):
    """Fused 4-layer MLP on one (tile_b, *) batch tile.

    bf16 matmul operands (MXU-native), f32 accumulation via
    preferred_element_type; bias add / ReLU / tanh in f32 (VPU / EUP).
    """
    # Zero-pad the latent 100 -> 128 lanes inside VMEM (guaranteed-zero pad
    # columns, keeps every matmul K lane-aligned) and cast to bf16.
    xpad_ref[...] = jnp.zeros_like(xpad_ref)
    xpad_ref[:, :D_IN] = x_ref[...].astype(jnp.bfloat16)
    x = xpad_ref[...]                                               # (tb, 128) bf16

    h = jnp.dot(x, w1_ref[...], preferred_element_type=jnp.float32) + b1_ref[...]
    h = jnp.maximum(h, 0.0).astype(jnp.bfloat16)

    h = jnp.dot(h, w2_ref[...], preferred_element_type=jnp.float32) + b2_ref[...]
    h = jnp.maximum(h, 0.0).astype(jnp.bfloat16)

    h = jnp.dot(h, w3_ref[...], preferred_element_type=jnp.float32) + b3_ref[...]
    h = jnp.maximum(h, 0.0).astype(jnp.bfloat16)

    h = jnp.dot(h, w4_ref[...], preferred_element_type=jnp.float32) + b4_ref[...]
    # Store only the 784 real columns (masked vst on the last vreg group):
    # no padded columns ever reach HBM, no wrapper slice copy, bf16 output.
    o_ref[...] = jnp.tanh(h[:, :D_OUT]).astype(jnp.bfloat16)


def _pick_tiling(B, max_tile_b=MAX_TILE_B):
    # >= 2 grid steps so both v7x TensorCores get work; rows multiple of 16
    # (bf16 sublane packing of the output block); minimal padded rows.
    n_tiles = max(2, pl.cdiv(B, max_tile_b))
    tile_b = _round_up(pl.cdiv(B, n_tiles), 16)
    return tile_b, n_tiles


def generator_forward(x, padded_params, max_tile_b=MAX_TILE_B):
    """x: (B, 100) float32 -> (B, 784) bfloat16 (tanh output in [-1, 1])."""
    (w1, b1), (w2, b2), (w3, b3), (w4, b4) = padded_params
    B = x.shape[0]
    tile_b, n_tiles = _pick_tiling(B, max_tile_b)
    Bp = tile_b * n_tiles

    xp = x if Bp == B else jnp.pad(x, ((0, Bp - B), (0, 0)))

    const = lambda a: pl.BlockSpec(a.shape, lambda i: (0, 0))   # VMEM-resident

    w_bytes = sum(int(a.size) * a.dtype.itemsize
                  for a in (w1, b1, w2, b2, w3, b3, w4, b4))
    cost = pl.CostEstimate(
        flops=2 * Bp * (D_IN_PAD * D_H1_PAD + D_H1_PAD * D_H2
                        + D_H2 * D_H3 + D_H3 * D_OUT_PAD),
        transcendentals=Bp * D_OUT,
        bytes_accessed=Bp * (D_IN * 4 + D_OUT * 2) + w_bytes)

    out = pl.pallas_call(
        generator_kernel,
        out_shape=jax.ShapeDtypeStruct((Bp, D_OUT), jnp.bfloat16),
        grid=(n_tiles,),
        in_specs=[
            pl.BlockSpec((tile_b, D_IN), lambda i: (i, 0)),   # 100 == full dim
            const(w1), const(b1),
            const(w2), const(b2),
            const(w3), const(b3),
            const(w4), const(b4),
        ],
        out_specs=pl.BlockSpec((tile_b, D_OUT), lambda i: (i, 0)),  # 784 == full dim
        scratch_shapes=[pltpu.VMEM((tile_b, D_IN_PAD), jnp.bfloat16)],
        compiler_params=pltpu.CompilerParams(
            dimension_semantics=("parallel",),       # megacore sharding on v7x
            vmem_limit_bytes=32 << 20),              # ample headroom on all gens
        cost_estimate=cost,
    )(xp, w1, b1, w2, b2, w3, b3, w4, b4)

    return out if Bp == B else out[:B]


def init_params(key):
    """Deterministic f32 params matching PyTorch nn.Linear default init.
    Weights stored as (in, out) (transpose of torch's weight)."""
    dims = [D_IN, D_H1, D_H2, D_H3, D_OUT]
    params = []
    for i in range(4):
        key, kw, kb = jax.random.split(key, 3)
        fan_in, fan_out = dims[i], dims[i + 1]
        bound = 1.0 / jnp.sqrt(fan_in)
        w = jax.random.uniform(kw, (fan_in, fan_out), jnp.float32, -bound, bound)
        b = jax.random.uniform(kb, (1, fan_out), jnp.float32, -bound, bound)
        params.append((w, b))
    return params


def prepare_params(params):
    """Zero-pad only the internal feature dims (100->128 rows of W1, 64->128
    hidden1, 784->896 W4 columns); weights bf16, biases f32.  Exact through
    the ReLUs; padded output columns never leave the kernel."""
    (w1, b1), (w2, b2), (w3, b3), (w4, b4) = params
    w1p = jnp.pad(w1, ((0, D_IN_PAD - D_IN), (0, D_H1_PAD - D_H1)))   # (128,128)
    b1p = jnp.pad(b1, ((0, 0), (0, D_H1_PAD - D_H1)))                 # (1,128)
    w2p = jnp.pad(w2, ((0, D_H1_PAD - D_H1), (0, 0)))                 # (128,128)
    w4p = jnp.pad(w4, ((0, 0), (0, D_OUT_PAD - D_OUT)))               # (256,896)
    b4p = jnp.pad(b4, ((0, 0), (0, D_OUT_PAD - D_OUT)))               # (1,896)
    ws = [w1p, w2p, w3, w4p]
    bs = [b1p, b2, b3, b4p]
    return tuple((w.astype(jnp.bfloat16), b.astype(jnp.float32))
                 for w, b in zip(ws, bs))


def reference_forward_f32(x, params):
    """Pure f32 reference == PyTorch module semantics."""
    h = x
    for i, (w, b) in enumerate(params):
        h = h @ w + b
        h = jnp.maximum(h, 0.0) if i < 3 else jnp.tanh(h)
    return h


def reference_forward_matched(x, padded_params):
    """Reference matching the kernel's numerics (padded bf16 operands,
    f32 accumulation / elementwise, bf16 output)."""
    B = x.shape[0]
    h = jnp.zeros((B, D_IN_PAD), jnp.bfloat16).at[:, :D_IN].set(x.astype(jnp.bfloat16))
    for i, (w, b) in enumerate(padded_params):
        h = jnp.dot(h, w, preferred_element_type=jnp.float32) + b
        if i < 3:
            h = jnp.maximum(h, 0.0).astype(jnp.bfloat16)
    return jnp.tanh(h[:, :D_OUT]).astype(jnp.bfloat16)


if __name__ == "__main__":
    key = jax.random.PRNGKey(0)
    key, kx = jax.random.split(key)

    # Small, non-aligned batch: exercises adaptive tiling (tile_b=160,
    # 2 grid steps, 20 padded rows) without large waste.
    B = 300
    x = jax.random.normal(kx, (B, D_IN), jnp.float32)   # latent noise vectors

    params = init_params(key)
    padded_params = prepare_params(params)

    fwd = jax.jit(generator_forward)
    out = jax.block_until_ready(fwd(x, padded_params))
    assert out.shape == (B, D_OUT) and out.dtype == jnp.bfloat16
    out_f32 = out.astype(jnp.float32)

    # Exact-numerics check (same bf16/f32 path as the kernel).
    ref_match = reference_forward_matched(x, padded_params).astype(jnp.float32)
    assert jnp.max(jnp.abs(out_f32 - ref_match)) < 2e-2, "mismatch vs matched-precision reference"

    # Semantic check vs the full-f32 PyTorch-equivalent forward
    # (tolerance accounts for bf16 matmul operands + bf16 output).
    ref_f32 = reference_forward_f32(x, params)
    assert jnp.max(jnp.abs(out_f32 - ref_f32)) < 5e-2, "mismatch vs f32 reference"

    print("KERNEL_OK")
</pallas_src>

<mosaic_0001>
module attributes {stable_mosaic.version = 11 : i64} {
  func.func @generator_kernel(%arg0: i32, %arg1: memref<160x100xf32, #tpu.memory_space<vmem>>, %arg2: memref<128x128xbf16, #tpu.memory_space<vmem>>, %arg3: memref<1x128xf32, #tpu.memory_space<vmem>>, %arg4: memref<128x128xbf16, #tpu.memory_space<vmem>>, %arg5: memref<1x128xf32, #tpu.memory_space<vmem>>, %arg6: memref<128x256xbf16, #tpu.memory_space<vmem>>, %arg7: memref<1x256xf32, #tpu.memory_space<vmem>>, %arg8: memref<256x896xbf16, #tpu.memory_space<vmem>>, %arg9: memref<1x896xf32, #tpu.memory_space<vmem>>, %arg10: memref<160x784xbf16, #tpu.memory_space<vmem>>, %arg11: memref<160x128xbf16, #tpu.memory_space<vmem>>) attributes {dimension_semantics = [#tpu.dimension_semantics<parallel>], iteration_bounds = array<i64: 2>, scalar_prefetch = 0 : i64, scratch_operands = 1 : i64, tpu.core_type = #tpu.core_type<tc>, window_params = [{transform_indices = @transform_0, window_bounds = array<i64: 160, 100>}, {pipeline_mode = #tpu.pipeline_mode<synchronous>, transform_indices = @transform_1, window_bounds = array<i64: 128, 128>}, {pipeline_mode = #tpu.pipeline_mode<synchronous>, transform_indices = @transform_2, window_bounds = array<i64: 1, 128>}, {pipeline_mode = #tpu.pipeline_mode<synchronous>, transform_indices = @transform_3, window_bounds = array<i64: 128, 128>}, {pipeline_mode = #tpu.pipeline_mode<synchronous>, transform_indices = @transform_4, window_bounds = array<i64: 1, 128>}, {pipeline_mode = #tpu.pipeline_mode<synchronous>, transform_indices = @transform_5, window_bounds = array<i64: 128, 256>}, {pipeline_mode = #tpu.pipeline_mode<synchronous>, transform_indices = @transform_6, window_bounds = array<i64: 1, 256>}, {pipeline_mode = #tpu.pipeline_mode<synchronous>, transform_indices = @transform_7, window_bounds = array<i64: 256, 896>}, {pipeline_mode = #tpu.pipeline_mode<synchronous>, transform_indices = @transform_8, window_bounds = array<i64: 1, 896>}, {transform_indices = @transform_9, window_bounds = array<i64: 160, 784>}]} {
    %cst = arith.constant 0.000000e+00 : bf16
    %0 = vector.broadcast %cst : bf16 to vector<160x128xbf16>
    %c0 = arith.constant 0 : index
    %c0_0 = arith.constant 0 : index
    %1 = vector.load %arg11[%c0, %c0_0] : memref<160x128xbf16, #tpu.memory_space<vmem>>, vector<160x128xbf16>
    tpu.vector_store %arg11[%c0, %c0_0], %0 {strides = array<i32>} : memref<160x128xbf16, #tpu.memory_space<vmem>>, vector<160x128xbf16>,
    %c0_1 = arith.constant 0 : index
    %c0_2 = arith.constant 0 : index
    %2 = vector.load %arg1[%c0_1, %c0_2] : memref<160x100xf32, #tpu.memory_space<vmem>>, vector<160x100xf32>
    %3 = arith.truncf %2 : vector<160x100xf32> to vector<160x100xbf16>
    %c0_3 = arith.constant 0 : index
    %c0_4 = arith.constant 0 : index
    %4 = vector.load %arg11[%c0_3, %c0_4] : memref<160x128xbf16, #tpu.memory_space<vmem>>, vector<160x100xbf16>
    tpu.vector_store %arg11[%c0_3, %c0_4], %3 {strides = array<i32>} : memref<160x128xbf16, #tpu.memory_space<vmem>>, vector<160x100xbf16>,
    %c0_5 = arith.constant 0 : index
    %c0_6 = arith.constant 0 : index
    %5 = vector.load %arg11[%c0_5, %c0_6] : memref<160x128xbf16, #tpu.memory_space<vmem>>, vector<160x128xbf16>
    %c0_7 = arith.constant 0 : index
    %c0_8 = arith.constant 0 : index
    %6 = vector.load %arg2[%c0_7, %c0_8] : memref<128x128xbf16, #tpu.memory_space<vmem>>, vector<128x128xbf16>
    %cst_9 = arith.constant dense<0.000000e+00> : vector<160x128xf32>
    %7 = tpu.matmul %5, %6, %cst_9 {dimension_numbers = #tpu.dot_dimension_numbers<[1], [0], [0], [1], [0, 0, 1, 1], [], []>} : vector<160x128xbf16>, vector<128x128xbf16>, vector<160x128xf32> -> vector<160x128xf32>
    %c0_10 = arith.constant 0 : index
    %c0_11 = arith.constant 0 : index
    %8 = vector.load %arg3[%c0_10, %c0_11] : memref<1x128xf32, #tpu.memory_space<vmem>>, vector<1x128xf32>
    %9 = vector.broadcast %8 : vector<1x128xf32> to vector<160x128xf32>
    %10 = arith.addf %7, %9 : vector<160x128xf32>
    %cst_12 = arith.constant 0.000000e+00 : f32
    %11 = vector.broadcast %cst_12 : f32 to vector<160x128xf32>
    %12 = arith.maximumf %10, %11 : vector<160x128xf32>
    %13 = arith.truncf %12 : vector<160x128xf32> to vector<160x128xbf16>
    %c0_13 = arith.constant 0 : index
    %c0_14 = arith.constant 0 : index
    %14 = vector.load %arg4[%c0_13, %c0_14] : memref<128x128xbf16, #tpu.memory_space<vmem>>, vector<128x128xbf16>
    %cst_15 = arith.constant dense<0.000000e+00> : vector<160x128xf32>
    %15 = tpu.matmul %13, %14, %cst_15 {dimension_numbers = #tpu.dot_dimension_numbers<[1], [0], [0], [1], [0, 0, 1, 1], [], []>} : vector<160x128xbf16>, vector<128x128xbf16>, vector<160x128xf32> -> vector<160x128xf32>
    %c0_16 = arith.constant 0 : index
    %c0_17 = arith.constant 0 : index
    %16 = vector.load %arg5[%c0_16, %c0_17] : memref<1x128xf32, #tpu.memory_space<vmem>>, vector<1x128xf32>
    %17 = vector.broadcast %16 : vector<1x128xf32> to vector<160x128xf32>
    %18 = arith.addf %15, %17 : vector<160x128xf32>
    %cst_18 = arith.constant 0.000000e+00 : f32
    %19 = vector.broadcast %cst_18 : f32 to vector<160x128xf32>
    %20 = arith.maximumf %18, %19 : vector<160x128xf32>
    %21 = arith.truncf %20 : vector<160x128xf32> to vector<160x128xbf16>
    %c0_19 = arith.constant 0 : index
    %c0_20 = arith.constant 0 : index
    %22 = vector.load %arg6[%c0_19, %c0_20] : memref<128x256xbf16, #tpu.memory_space<vmem>>, vector<128x256xbf16>
    %cst_21 = arith.constant dense<0.000000e+00> : vector<160x256xf32>
    %23 = tpu.matmul %21, %22, %cst_21 {dimension_numbers = #tpu.dot_dimension_numbers<[1], [0], [0], [1], [0, 0, 1, 1], [], []>} : vector<160x128xbf16>, vector<128x256xbf16>, vector<160x256xf32> -> vector<160x256xf32>
    %c0_22 = arith.constant 0 : index
    %c0_23 = arith.constant 0 : index
    %24 = vector.load %arg7[%c0_22, %c0_23] : memref<1x256xf32, #tpu.memory_space<vmem>>, vector<1x256xf32>
    %25 = vector.broadcast %24 : vector<1x256xf32> to vector<160x256xf32>
    %26 = arith.addf %23, %25 : vector<160x256xf32>
    %cst_24 = arith.constant 0.000000e+00 : f32
    %27 = vector.broadcast %cst_24 : f32 to vector<160x256xf32>
    %28 = arith.maximumf %26, %27 : vector<160x256xf32>
    %29 = arith.truncf %28 : vector<160x256xf32> to vector<160x256xbf16>
    %c0_25 = arith.constant 0 : index
    %c0_26 = arith.constant 0 : index
    %30 = vector.load %arg8[%c0_25, %c0_26] : memref<256x896xbf16, #tpu.memory_space<vmem>>, vector<256x896xbf16>
    %cst_27 = arith.constant dense<0.000000e+00> : vector<160x896xf32>
    %31 = tpu.matmul %29, %30, %cst_27 {dimension_numbers = #tpu.dot_dimension_numbers<[1], [0], [0], [1], [0, 0, 1, 1], [], []>} : vector<160x256xbf16>, vector<256x896xbf16>, vector<160x896xf32> -> vector<160x896xf32>
    %c0_28 = arith.constant 0 : index
    %c0_29 = arith.constant 0 : index
    %32 = vector.load %arg9[%c0_28, %c0_29] : memref<1x896xf32, #tpu.memory_space<vmem>>, vector<1x896xf32>
    %33 = vector.broadcast %32 : vector<1x896xf32> to vector<160x896xf32>
    %34 = arith.addf %31, %33 : vector<160x896xf32>
    %35 = vector.extract_strided_slice %34 {offsets = [0, 0], sizes = [160, 784], strides = [1, 1]} : vector<160x896xf32> to vector<160x784xf32>
    %36 = math.tanh %35 : vector<160x784xf32>
    %37 = arith.truncf %36 : vector<160x784xf32> to vector<160x784xbf16>
    %c0_30 = arith.constant 0 : index
    %c0_31 = arith.constant 0 : index
    %38 = vector.load %arg10[%c0_30, %c0_31] : memref<160x784xbf16, #tpu.memory_space<vmem>>, vector<160x784xbf16>
    tpu.vector_store %arg10[%c0_30, %c0_31], %37 {strides = array<i32>} : memref<160x784xbf16, #tpu.memory_space<vmem>>, vector<160x784xbf16>,
    return
  }
  func.func @transform_0(%arg0: i32) -> (i32, i32) {
    %c0_i32 = arith.constant 0 : i32
    %c0_i32_0 = arith.constant 0 : i32
    return %arg0, %c0_i32 : i32, i32
  }
  func.func @transform_1(%arg0: i32) -> (i32, i32) {
    %c0_i32 = arith.constant 0 : i32
    %c0_i32_0 = arith.constant 0 : i32
    %c0_i32_1 = arith.constant 0 : i32
    return %c0_i32, %c0_i32_0 : i32, i32
  }
  func.func @transform_2(%arg0: i32) -> (i32, i32) {
    %c0_i32 = arith.constant 0 : i32
    %c0_i32_0 = arith.constant 0 : i32
    %c0_i32_1 = arith.constant 0 : i32
    return %c0_i32, %c0_i32_0 : i32, i32
  }
  func.func @transform_3(%arg0: i32) -> (i32, i32) {
    %c0_i32 = arith.constant 0 : i32
    %c0_i32_0 = arith.constant 0 : i32
    %c0_i32_1 = arith.constant 0 : i32
    return %c0_i32, %c0_i32_0 : i32, i32
  }
  func.func @transform_4(%arg0: i32) -> (i32, i32) {
    %c0_i32 = arith.constant 0 : i32
    %c0_i32_0 = arith.constant 0 : i32
    %c0_i32_1 = arith.constant 0 : i32
    return %c0_i32, %c0_i32_0 : i32, i32
  }
  func.func @transform_5(%arg0: i32) -> (i32, i32) {
    %c0_i32 = arith.constant 0 : i32
    %c0_i32_0 = arith.constant 0 : i32
    %c0_i32_1 = arith.constant 0 : i32
    return %c0_i32, %c0_i32_0 : i32, i32
  }
  func.func @transform_6(%arg0: i32) -> (i32, i32) {
    %c0_i32 = arith.constant 0 : i32
    %c0_i32_0 = arith.constant 0 : i32
    %c0_i32_1 = arith.constant 0 : i32
    return %c0_i32, %c0_i32_0 : i32, i32
  }
  func.func @transform_7(%arg0: i32) -> (i32, i32) {
    %c0_i32 = arith.constant 0 : i32
    %c0_i32_0 = arith.constant 0 : i32
    %c0_i32_1 = arith.constant 0 : i32
    return %c0_i32, %c0_i32_0 : i32, i32
  }
  func.func @transform_8(%arg0: i32) -> (i32, i32) {
    %c0_i32 = arith.constant 0 : i32
    %c0_i32_0 = arith.constant 0 : i32
    %c0_i32_1 = arith.constant 0 : i32
    return %c0_i32, %c0_i32_0 : i32, i32
  }
  func.func @transform_9(%arg0: i32) -> (i32, i32) {
    %c0_i32 = arith.constant 0 : i32
    %c0_i32_0 = arith.constant 0 : i32
    return %arg0, %c0_i32 : i32, i32
  }
}

</mosaic_0001>

<llo_original>
// kernel: generator_forward.1
$region0: #{generator_forward.1}
  #allocation0 [shape = 'u32[]', space=smem, size = 0x4, offset = 0x4, fixed_abs, tag = 'smem constant byte address 0x4 - core index']
  #allocation1 [shape = 'u32[144,128]{1,0:T(1,128)}', space=vmem, size = 0x12000, scoped, tag = 'internal scratch']
  #allocation2 [shape = 'bf16[160,128]{1,0:T(16,128)(2,1)}', space=vmem, size = 0xa000, scoped, tag = 'scratch operand']
  %s0 = inlined_call_operand.vmem [shape: f32[320,100], index: 0, kind: input, shape index: {}]
  %s1 = inlined_call_operand.vmem [shape: bf16[128,128], index: 1, kind: input, shape index: {}]
  %s2 = inlined_call_operand.vmem [shape: f32[1,128], index: 2, kind: input, shape index: {}]
  %s3 = inlined_call_operand.vmem [shape: bf16[128,128], index: 3, kind: input, shape index: {}]
  %s4 = inlined_call_operand.vmem [shape: f32[1,128], index: 4, kind: input, shape index: {}]
  %s5 = inlined_call_operand.vmem [shape: bf16[128,256], index: 5, kind: input, shape index: {}]
  %s6 = inlined_call_operand.vmem [shape: f32[1,256], index: 6, kind: input, shape index: {}]
  %s7 = inlined_call_operand.hbm [shape: bf16[256,896], index: 7, kind: input, shape index: {}]
  %s8 = inlined_call_operand.vmem [shape: f32[1,896], index: 8, kind: input, shape index: {}]
  %s9 = inlined_call_operand.vmem [shape: bf16[320,784], index: 9, kind: output, shape index: {}]
  %s10 = sld [smem:[#allocation0]]
  $region73: #{generator_forward.1} parent=0
    _
  %s12 = ssub.s32 1, %s10
  %s13 = scalar_select 0, %s12, %s10
  $region1: #{generator_forward.1} parent=0
    #allocation3 [shape = 'u8[458752]{0}', space=vmem, size = 0x70000, scoped, tag = 'input window, operand 7, single buffered']
    #allocation4 [shape = 's32[2]{0}', space=sflag, size = 0x8, scoped, tag = 'scoped memory for generator_forward.1']
    %14 = vsyncpa [#allocation4], 0
    loop: start=0, step=1, limit=4
    $region2: #{generator_forward.1} parent=1 // loop_pre_header
      _
    $region3: #{generator_forward.1} parent=1 // loop_header
      %s16 = sphi 0, %s20
      %p17 = scmp.ge.s32.totalorder %s16, 4
      %s26 = sphi 0, %s28
      %s29 = sphi 0, %s26
      %s30 = sphi 0, %s29
      %s46 = sphi 0, %s30
      %s50 = sphi 0, %s50
      %s52 = sphi 0, %s50
      %s53 = sphi 0, %s52
      %s67 = sphi 0, %s53
      %s71 = sphi 0, %s71
      %s73 = sphi 0, %s71
      %s74 = sphi 0, %s73
      %s88 = sphi 0, %s74
      %s92 = sphi 0, %s92
      %s94 = sphi 0, %s92
      %s95 = sphi 0, %s94
      %s109 = sphi 0, %s95
      %s113 = sphi 0, %s113
      %s115 = sphi 0, %s113
      %s116 = sphi 0, %s115
      %s130 = sphi 0, %s116
      %s134 = sphi 0, %s134
      %s136 = sphi 0, %s134
      %s137 = sphi 0, %s136
      %s151 = sphi 0, %s137
      %s155 = sphi 0, %s155
      %s157 = sphi 0, %s155
      %s158 = sphi 0, %s157
      %s172 = sphi 0, %s158
      %s176 = sphi 0, %s176
      %s178 = sphi 0, %s176
      %s179 = sphi 0, %s178
      %s193 = sphi 0, %s179
      %s197 = sphi 0, %s197
      %s199 = sphi 0, %s197
      %s200 = sphi 0, %s199
      %s214 = sphi 0, %s200
      %s220 = sphi 0, %s222
      %s223 = sphi 0, %s220
      %s224 = sphi 0, %s223
      %s240 = sphi 0, %s224
    $region4: #{generator_forward.1} parent=1 // loop_header_branch
      %19 = sbr.rel (%p17) target = $region8
    $region5: #{generator_forward.1} parent=1 // loop_body
      %s21 = ssub.s32 %s16, 1
      %s22 = ssub.s32 %s16, 2
      %s23 = sadd.s32 %s16, 1
      %s24 = ssub.s32 %s16, %s23
      %p25 = scmp.eq.s32.totalorder %s24, 0
      %s27 = sadd.s32 %s26, 1
      %s28 = scalar_select %p25, %s26, %s27
      %p31 = pneg %p25
      %p32 = scmp.eq.s32.totalorder %s16, 1
      %p33 = por %p31, %p32
      %p34 = scmp.ne.s32.totalorder %s26, %s29
      %p35 = scmp.eq.s32.totalorder %s16, 0
      %p36 = por %p34, %p35
      %p37 = scmp.ne.s32.totalorder %s26, %s29
      %p38 = scmp.eq.s32.totalorder %s21, 1
      %p39 = por %p37, %p38
      %p40 = scmp.ne.s32.totalorder %s29, %s30
      %p41 = scmp.eq.s32.totalorder %s21, 0
      %p42 = por %p40, %p41
      %p43 = scmp.ne.s32.totalorder %s29, %s30
      %p44 = scmp.eq.s32.totalorder %s22, 1
      %p45 = por %p43, %p44
      %p47 = scmp.ne.s32.totalorder %s30, %s46
      %p48 = scmp.eq.s32.totalorder %s22, 0
      %p49 = por %p47, %p48
      %s51 = sadd.s32 %s50, 1
      %p54 = scmp.eq.s32.totalorder %s16, 1
      %p55 = scmp.ne.s32.totalorder %s50, %s52
      %p56 = scmp.eq.s32.totalorder %s16, 0
      %p57 = por %p55, %p56
      %p58 = scmp.ne.s32.totalorder %s50, %s52
      %p59 = scmp.eq.s32.totalorder %s21, 1
      %p60 = por %p58, %p59
      %p61 = scmp.ne.s32.totalorder %s52, %s53
      %p62 = scmp.eq.s32.totalorder %s21, 0
      %p63 = por %p61, %p62
      %p64 = scmp.ne.s32.totalorder %s52, %s53
      %p65 = scmp.eq.s32.totalorder %s22, 1
      %p66 = por %p64, %p65
      %p68 = scmp.ne.s32.totalorder %s53, %s67
      %p69 = scmp.eq.s32.totalorder %s22, 0
      %p70 = por %p68, %p69
      %s72 = sadd.s32 %s71, 1
      %p75 = scmp.eq.s32.totalorder %s16, 1
      %p76 = scmp.ne.s32.totalorder %s71, %s73
      %p77 = scmp.eq.s32.totalorder %s16, 0
      %p78 = por %p76, %p77
      %p79 = scmp.ne.s32.totalorder %s71, %s73
      %p80 = scmp.eq.s32.totalorder %s21, 1
      %p81 = por %p79, %p80
      %p82 = scmp.ne.s32.totalorder %s73, %s74
      %p83 = scmp.eq.s32.totalorder %s21, 0
      %p84 = por %p82, %p83
      %p85 = scmp.ne.s32.totalorder %s73, %s74
      %p86 = scmp.eq.s32.totalorder %s22, 1
      %p87 = por %p85, %p86
      %p89 = scmp.ne.s32.totalorder %s74, %s88
      %p90 = scmp.eq.s32.totalorder %s22, 0
      %p91 = por %p89, %p90
      %s93 = sadd.s32 %s92, 1
      %p96 = scmp.eq.s32.totalorder %s16, 1
      %p97 = scmp.ne.s32.totalorder %s92, %s94
      %p98 = scmp.eq.s32.totalorder %s16, 0
      %p99 = por %p97, %p98
      %p100 = scmp.ne.s32.totalorder %s92, %s94
      %p101 = scmp.eq.s32.totalorder %s21, 1
      %p102 = por %p100, %p101
      %p103 = scmp.ne.s32.totalorder %s94, %s95
      %p104 = scmp.eq.s32.totalorder %s21, 0
      %p105 = por %p103, %p104
      %p106 = scmp.ne.s32.totalorder %s94, %s95
      %p107 = scmp.eq.s32.totalorder %s22, 1
      %p108 = por %p106, %p107
      %p110 = scmp.ne.s32.totalorder %s95, %s109
      %p111 = scmp.eq.s32.totalorder %s22, 0
      %p112 = por %p110, %p111
      %s114 = sadd.s32 %s113, 1
      %p117 = scmp.eq.s32.totalorder %s16, 1
      %p118 = scmp.ne.s32.totalorder %s113, %s115
      %p119 = scmp.eq.s32.totalorder %s16, 0
      %p120 = por %p118, %p119
      %p121 = scmp.ne.s32.totalorder %s113, %s115
      %p122 = scmp.eq.s32.totalorder %s21, 1
      %p123 = por %p121, %p122
      %p124 = scmp.ne.s32.totalorder %s115, %s116
      %p125 = scmp.eq.s32.totalorder %s21, 0
      %p126 = por %p124, %p125
      %p127 = scmp.ne.s32.totalorder %s115, %s116
      %p128 = scmp.eq.s32.totalorder %s22, 1
      %p129 = por %p127, %p128
      %p131 = scmp.ne.s32.totalorder %s116, %s130
      %p132 = scmp.eq.s32.totalorder %s22, 0
      %p133 = por %p131, %p132
      %s135 = sadd.s32 %s134, 1
      %p138 = scmp.eq.s32.totalorder %s16, 1
      %p139 = scmp.ne.s32.totalorder %s134, %s136
      %p140 = scmp.eq.s32.totalorder %s16, 0
      %p141 = por %p139, %p140
      %p142 = scmp.ne.s32.totalorder %s134, %s136
      %p143 = scmp.eq.s32.totalorder %s21, 1
      %p144 = por %p142, %p143
      %p145 = scmp.ne.s32.totalorder %s136, %s137
      %p146 = scmp.eq.s32.totalorder %s21, 0
      %p147 = por %p145, %p146
      %p148 = scmp.ne.s32.totalorder %s136, %s137
      %p149 = scmp.eq.s32.totalorder %s22, 1
      %p150 = por %p148, %p149
      %p152 = scmp.ne.s32.totalorder %s137, %s151
      %p153 = scmp.eq.s32.totalorder %s22, 0
      %p154 = por %p152, %p153
      %s156 = sadd.s32 %s155, 1
      %p159 = scmp.eq.s32.totalorder %s16, 1
      %p160 = scmp.ne.s32.totalorder %s155, %s157
      %p161 = scmp.eq.s32.totalorder %s16, 0
      %p162 = por %p160, %p161
      %p163 = scmp.ne.s32.totalorder %s155, %s157
      %p164 = scmp.eq.s32.totalorder %s21, 1
      %p165 = por %p163, %p164
      %p166 = scmp.ne.s32.totalorder %s157, %s158
      %p167 = scmp.eq.s32.totalorder %s21, 0
      %p168 = por %p166, %p167
      %p169 = scmp.ne.s32.totalorder %s157, %s158
      %p170 = scmp.eq.s32.totalorder %s22, 1
      %p171 = por %p169, %p170
      %p173 = scmp.ne.s32.totalorder %s158, %s172
      %p174 = scmp.eq.s32.totalorder %s22, 0
      %p175 = por %p173, %p174
      %s177 = sadd.s32 %s176, 1
      %p180 = scmp.eq.s32.totalorder %s16, 1
      %p181 = scmp.ne.s32.totalorder %s176, %s178
      %p182 = scmp.eq.s32.totalorder %s16, 0
      %p183 = por %p181, %p182
      %p184 = scmp.ne.s32.totalorder %s176, %s178
      %p185 = scmp.eq.s32.totalorder %s21, 1
      %p186 = por %p184, %p185
      %p187 = scmp.ne.s32.totalorder %s178, %s179
      %p188 = scmp.eq.s32.totalorder %s21, 0
      %p189 = por %p187, %p188
      %p190 = scmp.ne.s32.totalorder %s178, %s179
      %p191 = scmp.eq.s32.totalorder %s22, 1
      %p192 = por %p190, %p191
      %p194 = scmp.ne.s32.totalorder %s179, %s193
      %p195 = scmp.eq.s32.totalorder %s22, 0
      %p196 = por %p194, %p195
      %s198 = sadd.s32 %s197, 1
      %p201 = scmp.eq.s32.totalorder %s16, 1
      %p202 = scmp.ne.s32.totalorder %s197, %s199
      %p203 = scmp.eq.s32.totalorder %s16, 0
      %p204 = por %p202, %p203
      %p205 = scmp.ne.s32.totalorder %s197, %s199
      %p206 = scmp.eq.s32.totalorder %s21, 1
      %p207 = por %p205, %p206
      %p208 = scmp.ne.s32.totalorder %s199, %s200
      %p209 = scmp.eq.s32.totalorder %s21, 0
      %p210 = por %p208, %p209
      %p211 = scmp.ne.s32.totalorder %s199, %s200
      %p212 = scmp.eq.s32.totalorder %s22, 1
      %p213 = por %p211, %p212
      %p215 = scmp.ne.s32.totalorder %s200, %s214
      %p216 = scmp.eq.s32.totalorder %s22, 0
      %p217 = por %p215, %p216
      %s218 = ssub.s32 %s16, %s23
      %p219 = scmp.eq.s32.totalorder %s218, 0
      %s221 = sadd.s32 %s220, 1
      %s222 = scalar_select %p219, %s220, %s221
      %p225 = pneg %p219
      %p226 = scmp.eq.s32.totalorder %s16, 1
      %p227 = por %p225, %p226
      %p228 = scmp.ne.s32.totalorder %s220, %s223
      %p229 = scmp.eq.s32.totalorder %s16, 0
      %p230 = por %p228, %p229
      %p231 = scmp.ne.s32.totalorder %s220, %s223
      %p232 = scmp.eq.s32.totalorder %s21, 1
      %p233 = por %p231, %p232
      %p234 = scmp.ne.s32.totalorder %s223, %s224
      %p235 = scmp.eq.s32.totalorder %s21, 0
      %p236 = por %p234, %p235
      %p237 = scmp.ne.s32.totalorder %s223, %s224
      %p238 = scmp.eq.s32.totalorder %s22, 1
      %p239 = por %p237, %p238
      %p241 = scmp.ne.s32.totalorder %s224, %s240
      %p242 = scmp.eq.s32.totalorder %s22, 0
      %p243 = por %p241, %p242
      %p244 = scmp.le.s32.totalorder 1, %s16
      %p245 = scmp.lt.s32.totalorder %s16, 3
      %p246 = pnand %p244, %p245
      %p247 = pneg %p246
      // Predicated region
      $region9: #{generator_forward.1} parent=5 // pred_check
        _
      $region10: #{generator_forward.1} parent=5 // pred_check_branch
        %249 = sbr.rel (%p246) target = $region12
      $region11: #{generator_forward.1} parent=5 // pred_region
        %s250 = ssub.s32 %s16, 1
        // Predicated region
        $region13: #{generator_forward.1} parent=11 // pred_check
          %p251 = pneg %p63
        $region14: #{generator_forward.1} parent=11 // pred_check_branch
          %253 = sbr.rel (%p251) target = $region16
        $region15: #{generator_forward.1} parent=11 // pred_region
          _
        $region16: #{generator_forward.1} parent=11 // pred_fallthru
          _
        // Predicated region
        $region17: #{generator_forward.1} parent=11 // pred_check
          %p254 = pneg %p84
        $region18: #{generator_forward.1} parent=11 // pred_check_branch
          %256 = sbr.rel (%p254) target = $region20
        $region19: #{generator_forward.1} parent=11 // pred_region
          _
        $region20: #{generator_forward.1} parent=11 // pred_fallthru
          _
        // Predicated region
        $region21: #{generator_forward.1} parent=11 // pred_check
          %p257 = pneg %p105
        $region22: #{generator_forward.1} parent=11 // pred_check_branch
          %259 = sbr.rel (%p257) target = $region24
        $region23: #{generator_forward.1} parent=11 // pred_region
          _
        $region24: #{generator_forward.1} parent=11 // pred_fallthru
          _
        // Predicated region
        $region25: #{generator_forward.1} parent=11 // pred_check
          %p260 = pneg %p126
        $region26: #{generator_forward.1} parent=11 // pred_check_branch
          %262 = sbr.rel (%p260) target = $region28
        $region27: #{generator_forward.1} parent=11 // pred_region
          _
        $region28: #{generator_forward.1} parent=11 // pred_fallthru
          _
        // Predicated region
        $region29: #{generator_forward.1} parent=11 // pred_check
          %p263 = pneg %p147
        $region30: #{generator_forward.1} parent=11 // pred_check_branch
          %265 = sbr.rel (%p263) target = $region32
        $region31: #{generator_forward.1} parent=11 // pred_region
          _
        $region32: #{generator_forward.1} parent=11 // pred_fallthru
          _
        // Predicated region
        $region33: #{generator_forward.1} parent=11 // pred_check
          %p266 = pneg %p168
        $region34: #{generator_forward.1} parent=11 // pred_check_branch
          %268 = sbr.rel (%p266) target = $region36
        $region35: #{generator_forward.1} parent=11 // pred_region
          _
        $region36: #{generator_forward.1} parent=11 // pred_fallthru
          _
        // Predicated region
        $region37: #{generator_forward.1} parent=11 // pred_check
          %p269 = pneg %p189
        $region38: #{generator_forward.1} parent=11 // pred_check_branch
          %271 = sbr.rel (%p269) target = $region40
        $region39: #{generator_forward.1} parent=11 // pred_region
          %s273 = ssub.s32 14336, 14336
          %274 = vsyncadd [#allocation4], %s273
          %s275 = sshll.u32 [#allocation3], 4
          %s276 = int_to_ptr.vmem [resolvable:$true] %s275
          %281 = dma.hbm_to_vmem [thread:$0]  %s7, 14336, %s276, [#allocation4], 448, 448, 28
        $region40: #{generator_forward.1} parent=11 // pred_fallthru
          _
        // Predicated region
        $region41: #{generator_forward.1} parent=11 // pred_check
          %p282 = pneg %p210
        $region42: #{generator_forward.1} parent=11 // pred_check_branch
          %284 = sbr.rel (%p282) target = $region44
        $region43: #{generator_forward.1} parent=11 // pred_region
          _
        $region44: #{generator_forward.1} parent=11 // pred_fallthru
          _
      $region12: #{generator_forward.1} parent=5 // pred_fallthru
        _
      %p285 = scmp.lt.s32.totalorder %s16, 2
      // Predicated region
      $region45: #{generator_forward.1} parent=5 // pred_check
        %p286 = pneg %p285
      $region46: #{generator_forward.1} parent=5 // pred_check_branch
        %288 = sbr.rel (%p286) target = $region48
      $region47: #{generator_forward.1} parent=5 // pred_region
        // Predicated region
        $region49: #{generator_forward.1} parent=47 // pred_check
          %p289 = pneg %p36
        $region50: #{generator_forward.1} parent=47 // pred_check_branch
          %291 = sbr.rel (%p289) target = $region52
        $region51: #{generator_forward.1} parent=47 // pred_region
          %s292 = smul.u32 20, %s16
          %p293 = scmp.lt.s32.totalorder %s292, 39
          %s294 = scalar_select %p293, %s292, 39
          %s295 = smul.addr %s294, 8
          %s296 = scalar_lea.vmem %s0, %s295
          %s297 = smul.u32 20, %s16
        $region52: #{generator_forward.1} parent=47 // pred_fallthru
          _
      $region48: #{generator_forward.1} parent=5 // pred_fallthru
        _
      %p298 = scmp.le.s32.totalorder 1, %s16
      %p299 = scmp.lt.s32.totalorder %s16, 3
      %p300 = pnand %p298, %p299
      %p301 = pneg %p300
      // Predicated region
      $region53: #{generator_forward.1} parent=5 // pred_check
        _
      $region54: #{generator_forward.1} parent=5 // pred_check_branch
        %303 = sbr.rel (%p300) target = $region56
      $region55: #{generator_forward.1} parent=5 // pred_region
        %s304 = ssub.s32 %s16, 1
        // Predicated region
        $region57: #{generator_forward.1} parent=55 // pred_check
          %p305 = pneg %p189
        $region58: #{generator_forward.1} parent=55 // pred_check_branch
          %307 = sbr.rel (%p305) target = $region60
        $region59: #{generator_forward.1} parent=55 // pred_region
          %308 = dma.done [#allocation4], 14336
        $region60: #{generator_forward.1} parent=55 // pred_fallthru
          _
        %s309 = smul.u32 20, %s21
        %p310 = scmp.lt.s32.totalorder %s309, 39
        %s311 = scalar_select %p310, %s309, 39
        %s312 = smul.addr %s311, 8
        %s313 = scalar_lea.vmem %s0, %s312
        %p314 = pneg %p42
        %p315 = pneg %p39
        %p316 = pneg %p63
        %p317 = pneg %p60
        %p318 = pneg %p84
        %p319 = pneg %p81
        %p320 = pneg %p105
        %p321 = pneg %p102
        %p322 = pneg %p126
        %p323 = pneg %p123
        %p324 = pneg %p147
        %p325 = pneg %p144
        %p326 = pneg %p168
        %p327 = pneg %p165
        %p328 = pneg %p189
        %p329 = pneg %p186
        %p330 = pneg %p210
        %p331 = pneg %p207
        %p332 = pneg %p236
        %p333 = pneg %p233
        %s334 = smul.u32 20, %s21
        %p335 = scmp.lt.s32.totalorder %s334, 39
        %s336 = scalar_select %p335, %s334, 39
        %s337 = smul.addr %s336, 7
        %s338 = smul.addr %s337, 4
        %s339 = scalar_lea.vmem %s9, %s338
        %s340 = smul.u32 20, %s21
        %p341 = scmp.lt.s32.totalorder %s340, 39
        %s342 = scalar_select %p341, %s340, 39
        %s343 = smul.addr %s342, 8
        %s344 = scalar_lea.vmem %s0, %s343
        %s345 = smul.u32 20, %s21
        %s346 = smul.u32 20, %s21
        %p347 = scmp.lt.s32.totalorder %s346, 39
        %s348 = scalar_select %p347, %s346, 39
        %s349 = smul.addr %s348, 7
        %s350 = smul.addr %s349, 4
        %s351 = scalar_lea.vmem %s9, %s350
        %s352 = smul.u32 20, %s21
        %354 = vst [vmem:[#allocation2] sm:$0xff] 0
        %355 = vst [vmem:[#allocation2 + $0x8] sm:$0xff] 0
        %356 = vst [vmem:[#allocation2 + $0x10] sm:$0xff] 0
        %357 = vst [vmem:[#allocation2 + $0x18] sm:$0xff] 0
        %358 = vst [vmem:[#allocation2 + $0x20] sm:$0xff] 0
        %359 = vst [vmem:[#allocation2 + $0x28] sm:$0xff] 0
        %360 = vst [vmem:[#allocation2 + $0x30] sm:$0xff] 0
        %361 = vst [vmem:[#allocation2 + $0x38] sm:$0xff] 0
        %362 = vst [vmem:[#allocation2 + $0x40] sm:$0xff] 0
        %363 = vst [vmem:[#allocation2 + $0x48] sm:$0xff] 0
        %v364 = vld [vmem:[%s344] sm:$0xff]
        %v365 = vld [vmem:[%s344 + $0x8] sm:$0xff]
        %v366 = vld [vmem:[%s344 + $0x10] sm:$0xff]
        %v367 = vld [vmem:[%s344 + $0x18] sm:$0xff]
        %v368 = vld [vmem:[%s344 + $0x20] sm:$0xff]
        %v369 = vld [vmem:[%s344 + $0x28] sm:$0xff]
        %v370 = vld [vmem:[%s344 + $0x30] sm:$0xff]
        %v371 = vld [vmem:[%s344 + $0x38] sm:$0xff]
        %v372 = vld [vmem:[%s344 + $0x40] sm:$0xff]
        %v373 = vld [vmem:[%s344 + $0x48] sm:$0xff]
        %v374 = vld [vmem:[%s344 + $0x50] sm:$0xff]
        %v375 = vld [vmem:[%s344 + $0x58] sm:$0xff]
        %v376 = vld [vmem:[%s344 + $0x60] sm:$0xff]
        %v377 = vld [vmem:[%s344 + $0x68] sm:$0xff]
        %v378 = vld [vmem:[%s344 + $0x70] sm:$0xff]
        %v379 = vld [vmem:[%s344 + $0x78] sm:$0xff]
        %v380 = vld [vmem:[%s344 + $0x80] sm:$0xff]
        %v381 = vld [vmem:[%s344 + $0x88] sm:$0xff]
        %v382 = vld [vmem:[%s344 + $0x90] sm:$0xff]
        %v383 = vld [vmem:[%s344 + $0x98] sm:$0xff]
        %v384 = vpack.c.bf16 %v365, %v364
        %v385 = vpack.c.bf16 %v367, %v366
        %v386 = vpack.c.bf16 %v369, %v368
        %v387 = vpack.c.bf16 %v371, %v370
        %v388 = vpack.c.bf16 %v373, %v372
        %v389 = vpack.c.bf16 %v375, %v374
        %v390 = vpack.c.bf16 %v377, %v376
        %v391 = vpack.c.bf16 %v379, %v378
        %v392 = vpack.c.bf16 %v381, %v380
        %v393 = vpack.c.bf16 %v383, %v382
        %vm394 = vcmask 818176
        %395 = vst.msk [vmem:[#allocation2] sm:$0xff] %vm394, %v384
        %396 = vst.msk [vmem:[#allocation2 + $0x8] sm:$0xff] %vm394, %v385
        %397 = vst.msk [vmem:[#allocation2 + $0x10] sm:$0xff] %vm394, %v386
        %398 = vst.msk [vmem:[#allocation2 + $0x18] sm:$0xff] %vm394, %v387
        %399 = vst.msk [vmem:[#allocation2 + $0x20] sm:$0xff] %vm394, %v388
        %400 = vst.msk [vmem:[#allocation2 + $0x28] sm:$0xff] %vm394, %v389
        %401 = vst.msk [vmem:[#allocation2 + $0x30] sm:$0xff] %vm394, %v390
        %402 = vst.msk [vmem:[#allocation2 + $0x38] sm:$0xff] %vm394, %v391
        %403 = vst.msk [vmem:[#allocation2 + $0x40] sm:$0xff] %vm394, %v392
        %404 = vst.msk [vmem:[#allocation2 + $0x48] sm:$0xff] %vm394, %v393
        %v405 = vld [vmem:[#allocation2] sm:$0xff]
        %v406 = vld [vmem:[#allocation2 + $0x8] sm:$0xff]
        %v407 = vld [vmem:[#allocation2 + $0x10] sm:$0xff]
        %v408 = vld [vmem:[#allocation2 + $0x18] sm:$0xff]
        %v409 = vld [vmem:[#allocation2 + $0x20] sm:$0xff]
        %v410 = vld [vmem:[#allocation2 + $0x28] sm:$0xff]
        %v411 = vld [vmem:[#allocation2 + $0x30] sm:$0xff]
        %v412 = vld [vmem:[#allocation2 + $0x38] sm:$0xff]
        %v413 = vld [vmem:[#allocation2 + $0x40] sm:$0xff]
        %v414 = vld [vmem:[#allocation2 + $0x48] sm:$0xff]
        %v415 = vld [vmem:[%s1] sm:$0xf]
        %v416 = vld [vmem:[%s1 + $0x4] sm:$0xf]
        %v417 = vld [vmem:[%s1 + $0x8] sm:$0xf]
        %v418 = vld [vmem:[%s1 + $0xc] sm:$0xf]
        %v419 = vld [vmem:[%s1 + $0x10] sm:$0xf]
        %v420 = vld [vmem:[%s1 + $0x14] sm:$0xf]
        %v421 = vld [vmem:[%s1 + $0x18] sm:$0xf]
        %v422 = vld [vmem:[%s1 + $0x1c] sm:$0xf]
        %v423 = vld [vmem:[%s1 + $0x20] sm:$0xf]
        %v424 = vld [vmem:[%s1 + $0x24] sm:$0xf]
        %v425 = vld [vmem:[%s1 + $0x28] sm:$0xf]
        %v426 = vld [vmem:[%s1 + $0x2c] sm:$0xf]
        %v427 = vld [vmem:[%s1 + $0x30] sm:$0xf]
        %v428 = vld [vmem:[%s1 + $0x34] sm:$0xf]
        %v429 = vld [vmem:[%s1 + $0x38] sm:$0xf]
        %v430 = vld [vmem:[%s1 + $0x3c] sm:$0xf]
        %v431 = vld [vmem:[%s2] sm:$0x1]
        %v433 = vlaneseq
        %v434 = vshrl.u32 %v433, 7
        %v435 = vsub.s32 0, %v434
        %v436 = vrot.slane %v431, %v435
        %v454 = vunpack.c.l.b16 %v415
        %v455 = vunpack.c.l.b16 %v416
        %v456 = vunpack.c.l.b16 %v417
        %v457 = vunpack.c.l.b16 %v418
        %v458 = vunpack.c.l.b16 %v419
        %v459 = vunpack.c.l.b16 %v420
        %v460 = vunpack.c.l.b16 %v421
        %v461 = vunpack.c.l.b16 %v422
        %v462 = vunpack.c.l.b16 %v423
        %v463 = vunpack.c.l.b16 %v424
        %v464 = vunpack.c.l.b16 %v425
        %v465 = vunpack.c.l.b16 %v426
        %v466 = vunpack.c.l.b16 %v427
        %v467 = vunpack.c.l.b16 %v428
        %v468 = vunpack.c.l.b16 %v429
        %v469 = vunpack.c.l.b16 %v430
        %v470 = vpack.c.b16 %v455, %v454
        %v471 = vpack.c.b16 %v457, %v456
        %v472 = vpack.c.b16 %v459, %v458
        %v473 = vpack.c.b16 %v461, %v460
        %v474 = vpack.c.b16 %v463, %v462
        %v475 = vpack.c.b16 %v465, %v464
        %v476 = vpack.c.b16 %v467, %v466
        %v477 = vpack.c.b16 %v469, %v468
        %486 = vmatprep.subr.bf16.mxu0 0
        %487 = vmatpush1.bf16.msra.mxu0 %v470
        %488 = vmatprep.subr.bf16.mxu0 0
        %489 = vmatpush1.bf16.msra.mxu0 %v471
        %490 = vmatprep.subr.bf16.mxu0 0
        %491 = vmatpush1.bf16.msra.mxu0 %v472
        %492 = vmatprep.subr.bf16.mxu0 0
        %493 = vmatpush1.bf16.msra.mxu0 %v473
        %494 = vmatprep.subr.bf16.mxu0 0
        %495 = vmatpush1.bf16.msra.mxu0 %v474
        %496 = vmatprep.subr.bf16.mxu0 0
        %497 = vmatpush1.bf16.msra.mxu0 %v475
        %498 = vmatprep.subr.bf16.mxu0 0
        %499 = vmatpush1.bf16.msra.mxu0 %v476
        %500 = vmatprep.subr.bf16.mxu0 0
        %501 = vmatpush1.bf16.msra.mxu0 %v477
        %502 = vmatprep.subr.bf16.mxu0 0
        %503 = vmatpush1.bf16.msra.mxu0 0
        %504 = vmatprep.subr.bf16.mxu0 0
        %505 = vmatpush1.bf16.msra.mxu0 0
        %506 = vmatprep.subr.bf16.mxu0 0
        %507 = vmatpush1.bf16.msra.mxu0 0
        %508 = vmatprep.subr.bf16.mxu0 0
        %509 = vmatpush1.bf16.msra.mxu0 0
        %510 = vmatprep.subr.bf16.mxu0 0
        %511 = vmatpush1.bf16.msra.mxu0 0
        %512 = vmatprep.subr.bf16.mxu0 0
        %513 = vmatpush1.bf16.msra.mxu0 0
        %514 = vmatprep.subr.bf16.mxu0 0
        %515 = vmatpush1.bf16.msra.mxu0 0
        %516 = vmatprep.subr.bf16.mxu0 0
        %517 = vmatpush1.bf16.msra.mxu0 0
        %518 = vmatprep.mubr.bf16.mxu0 0
        %519 = vmatmul.mubr.bf16.gmra.mrb[0].mxu0 %v405
        %v520 = vpop.f32.mrb[0].mxu0
        %v521 = vadd.f32 %v436, %v520
        %v522 = vpop.f32.mrb[0].mxu0
        %v523 = vpop.f32.mrb[0].mxu0
        %v524 = vadd.f32 %v436, %v523
        %v525 = vpop.f32.mrb[0].mxu0
        %526 = vmatprep.mubr.bf16.mxu0 0
        %527 = vmatmul.mubr.bf16.gmra.mrb[0].mxu0 %v406
        %v528 = vpop.f32.mrb[0].mxu0
        %v529 = vadd.f32 %v436, %v528
        %v530 = vpop.f32.mrb[0].mxu0
        %v531 = vpop.f32.mrb[0].mxu0
        %v532 = vadd.f32 %v436, %v531
        %v533 = vpop.f32.mrb[0].mxu0
        %534 = vmatprep.mubr.bf16.mxu0 0
        %535 = vmatmul.mubr.bf16.gmra.mrb[0].mxu0 %v407
        %v536 = vpop.f32.mrb[0].mxu0
        %v537 = vadd.f32 %v436, %v536
        %v538 = vpop.f32.mrb[0].mxu0
        %v539 = vpop.f32.mrb[0].mxu0
        %v540 = vadd.f32 %v436, %v539
        %v541 = vpop.f32.mrb[0].mxu0
        %542 = vmatprep.mubr.bf16.mxu0 0
        %543 = vmatmul.mubr.bf16.gmra.mrb[0].mxu0 %v408
        %v544 = vpop.f32.mrb[0].mxu0
        %v545 = vadd.f32 %v436, %v544
        %v546 = vpop.f32.mrb[0].mxu0
        %v547 = vpop.f32.mrb[0].mxu0
        %v548 = vadd.f32 %v436, %v547
        %v549 = vpop.f32.mrb[0].mxu0
        %550 = vmatprep.mubr.bf16.mxu0 0
        %551 = vmatmul.mubr.bf16.gmra.mrb[0].mxu0 %v409
        %v552 = vpop.f32.mrb[0].mxu0
        %v553 = vadd.f32 %v436, %v552
        %v554 = vpop.f32.mrb[0].mxu0
        %v555 = vpop.f32.mrb[0].mxu0
        %v556 = vadd.f32 %v436, %v555
        %v557 = vpop.f32.mrb[0].mxu0
        %558 = vmatprep.mubr.bf16.mxu0 0
        %559 = vmatmul.mubr.bf16.gmra.mrb[0].mxu0 %v410
        %v560 = vpop.f32.mrb[0].mxu0
        %v561 = vadd.f32 %v436, %v560
        %v562 = vpop.f32.mrb[0].mxu0
        %v563 = vpop.f32.mrb[0].mxu0
        %v564 = vadd.f32 %v436, %v563
        %v565 = vpop.f32.mrb[0].mxu0
        %566 = vmatprep.mubr.bf16.mxu0 0
        %567 = vmatmul.mubr.bf16.gmra.mrb[0].mxu0 %v411
        %v568 = vpop.f32.mrb[0].mxu0
        %v569 = vadd.f32 %v436, %v568
        %v570 = vpop.f32.mrb[0].mxu0
        %v571 = vpop.f32.mrb[0].mxu0
        %v572 = vadd.f32 %v436, %v571
        %v573 = vpop.f32.mrb[0].mxu0
        %574 = vmatprep.mubr.bf16.mxu0 0
        %575 = vmatmul.mubr.bf16.gmra.mrb[0].mxu0 %v412
        %v576 = vpop.f32.mrb[0].mxu0
        %v577 = vadd.f32 %v436, %v576
        %v578 = vpop.f32.mrb[0].mxu0
        %v579 = vpop.f32.mrb[0].mxu0
        %v580 = vadd.f32 %v436, %v579
        %v581 = vpop.f32.mrb[0].mxu0
        %582 = vmatprep.mubr.bf16.mxu0 0
        %583 = vmatmul.mubr.bf16.gmra.mrb[0].mxu0 %v413
        %v584 = vpop.f32.mrb[0].mxu0
        %v585 = vadd.f32 %v436, %v584
        %v586 = vpop.f32.mrb[0].mxu0
        %v587 = vpop.f32.mrb[0].mxu0
        %v588 = vadd.f32 %v436, %v587
        %v589 = vpop.f32.mrb[0].mxu0
        %590 = vmatprep.mubr.bf16.mxu0 0
        %591 = vmatmul.mubr.bf16.gmra.mrb[0].mxu0 %v414
        %v592 = vpop.f32.mrb[0].mxu0
        %v593 = vadd.f32 %v436, %v592
        %v594 = vpop.f32.mrb[0].mxu0
        %v595 = vpop.f32.mrb[0].mxu0
        %v596 = vadd.f32 %v436, %v595
        %v597 = vpop.f32.mrb[0].mxu0
        %598 = vdwg.mxu0
        %v599 = vmax.f32 %v521, 0.0
        %v600 = vmax.f32 %v524, 0.0
        %v601 = vmax.f32 %v529, 0.0
        %v602 = vmax.f32 %v532, 0.0
        %v603 = vmax.f32 %v537, 0.0
        %v604 = vmax.f32 %v540, 0.0
        %v605 = vmax.f32 %v545, 0.0
        %v606 = vmax.f32 %v548, 0.0
        %v607 = vmax.f32 %v553, 0.0
        %v608 = vmax.f32 %v556, 0.0
        %v609 = vmax.f32 %v561, 0.0
        %v610 = vmax.f32 %v564, 0.0
        %v611 = vmax.f32 %v569, 0.0
        %v612 = vmax.f32 %v572, 0.0
        %v613 = vmax.f32 %v577, 0.0
        %v614 = vmax.f32 %v580, 0.0
        %v615 = vmax.f32 %v585, 0.0
        %v616 = vmax.f32 %v588, 0.0
        %v617 = vmax.f32 %v593, 0.0
        %v618 = vmax.f32 %v596, 0.0
        %v619 = vpack.c.bf16 %v600, %v599
        %v620 = vpack.c.bf16 %v602, %v601
        %v621 = vpack.c.bf16 %v604, %v603
        %v622 = vpack.c.bf16 %v606, %v605
        %v623 = vpack.c.bf16 %v608, %v607
        %v624 = vpack.c.bf16 %v610, %v609
        %v625 = vpack.c.bf16 %v612, %v611
        %v626 = vpack.c.bf16 %v614, %v613
        %v627 = vpack.c.bf16 %v616, %v615
        %v628 = vpack.c.bf16 %v618, %v617
        %v629 = vld [vmem:[%s3] sm:$0xf]
        %v630 = vld [vmem:[%s3 + $0x4] sm:$0xf]
        %v631 = vld [vmem:[%s3 + $0x8] sm:$0xf]
        %v632 = vld [vmem:[%s3 + $0xc] sm:$0xf]
        %v633 = vld [vmem:[%s3 + $0x10] sm:$0xf]
        %v634 = vld [vmem:[%s3 + $0x14] sm:$0xf]
        %v635 = vld [vmem:[%s3 + $0x18] sm:$0xf]
        %v636 = vld [vmem:[%s3 + $0x1c] sm:$0xf]
        %v637 = vld [vmem:[%s3 + $0x20] sm:$0xf]
        %v638 = vld [vmem:[%s3 + $0x24] sm:$0xf]
        %v639 = vld [vmem:[%s3 + $0x28] sm:$0xf]
        %v640 = vld [vmem:[%s3 + $0x2c] sm:$0xf]
        %v641 = vld [vmem:[%s3 + $0x30] sm:$0xf]
        %v642 = vld [vmem:[%s3 + $0x34] sm:$0xf]
        %v643 = vld [vmem:[%s3 + $0x38] sm:$0xf]
        %v644 = vld [vmem:[%s3 + $0x3c] sm:$0xf]
        %v645 = vld [vmem:[%s4] sm:$0x1]
        %v647 = vlaneseq
        %v648 = vshrl.u32 %v647, 7
        %v649 = vsub.s32 0, %v648
        %v650 = vrot.slane %v645, %v649
        %v668 = vunpack.c.l.b16 %v629
        %v669 = vunpack.c.l.b16 %v630
        %v670 = vunpack.c.l.b16 %v631
        %v671 = vunpack.c.l.b16 %v632
        %v672 = vunpack.c.l.b16 %v633
        %v673 = vunpack.c.l.b16 %v634
        %v674 = vunpack.c.l.b16 %v635
        %v675 = vunpack.c.l.b16 %v636
        %v676 = vunpack.c.l.b16 %v637
        %v677 = vunpack.c.l.b16 %v638
        %v678 = vunpack.c.l.b16 %v639
        %v679 = vunpack.c.l.b16 %v640
        %v680 = vunpack.c.l.b16 %v641
        %v681 = vunpack.c.l.b16 %v642
        %v682 = vunpack.c.l.b16 %v643
        %v683 = vunpack.c.l.b16 %v644
        %v684 = vpack.c.b16 %v669, %v668
        %v685 = vpack.c.b16 %v671, %v670
        %v686 = vpack.c.b16 %v673, %v672
        %v687 = vpack.c.b16 %v675, %v674
        %v688 = vpack.c.b16 %v677, %v676
        %v689 = vpack.c.b16 %v679, %v678
        %v690 = vpack.c.b16 %v681, %v680
        %v691 = vpack.c.b16 %v683, %v682
        %700 = vmatprep.subr.bf16.mxu0 0
        %701 = vmatpush1.bf16.msra.mxu0 %v684
        %702 = vmatprep.subr.bf16.mxu0 0
        %703 = vmatpush1.bf16.msra.mxu0 %v685
        %704 = vmatprep.subr.bf16.mxu0 0
        %705 = vmatpush1.bf16.msra.mxu0 %v686
        %706 = vmatprep.subr.bf16.mxu0 0
        %707 = vmatpush1.bf16.msra.mxu0 %v687
        %708 = vmatprep.subr.bf16.mxu0 0
        %709 = vmatpush1.bf16.msra.mxu0 %v688
        %710 = vmatprep.subr.bf16.mxu0 0
        %711 = vmatpush1.bf16.msra.mxu0 %v689
        %712 = vmatprep.subr.bf16.mxu0 0
        %713 = vmatpush1.bf16.msra.mxu0 %v690
        %714 = vmatprep.subr.bf16.mxu0 0
        %715 = vmatpush1.bf16.msra.mxu0 %v691
        %716 = vmatprep.subr.bf16.mxu0 0
        %717 = vmatpush1.bf16.msra.mxu0 0
        %718 = vmatprep.subr.bf16.mxu0 0
        %719 = vmatpush1.bf16.msra.mxu0 0
        %720 = vmatprep.subr.bf16.mxu0 0
        %721 = vmatpush1.bf16.msra.mxu0 0
        %722 = vmatprep.subr.bf16.mxu0 0
        %723 = vmatpush1.bf16.msra.mxu0 0
        %724 = vmatprep.subr.bf16.mxu0 0
        %725 = vmatpush1.bf16.msra.mxu0 0
        %726 = vmatprep.subr.bf16.mxu0 0
        %727 = vmatpush1.bf16.msra.mxu0 0
        %728 = vmatprep.subr.bf16.mxu0 0
        %729 = vmatpush1.bf16.msra.mxu0 0
        %730 = vmatprep.subr.bf16.mxu0 0
        %731 = vmatpush1.bf16.msra.mxu0 0
        %732 = vmatprep.mubr.bf16.mxu0 0
        %733 = vmatmul.mubr.bf16.gmra.mrb[0].mxu0 %v619
        %v734 = vpop.f32.mrb[0].mxu0
        %v735 = vadd.f32 %v650, %v734
        %v736 = vpop.f32.mrb[0].mxu0
        %v737 = vpop.f32.mrb[0].mxu0
        %v738 = vadd.f32 %v650, %v737
        %v739 = vpop.f32.mrb[0].mxu0
        %740 = vmatprep.mubr.bf16.mxu0 0
        %741 = vmatmul.mubr.bf16.gmra.mrb[0].mxu0 %v620
        %v742 = vpop.f32.mrb[0].mxu0
        %v743 = vadd.f32 %v650, %v742
        %v744 = vpop.f32.mrb[0].mxu0
        %v745 = vpop.f32.mrb[0].mxu0
        %v746 = vadd.f32 %v650, %v745
        %v747 = vpop.f32.mrb[0].mxu0
        %748 = vmatprep.mubr.bf16.mxu0 0
        %749 = vmatmul.mubr.bf16.gmra.mrb[0].mxu0 %v621
        %v750 = vpop.f32.mrb[0].mxu0
        %v751 = vadd.f32 %v650, %v750
        %v752 = vpop.f32.mrb[0].mxu0
        %v753 = vpop.f32.mrb[0].mxu0
        %v754 = vadd.f32 %v650, %v753
        %v755 = vpop.f32.mrb[0].mxu0
        %756 = vmatprep.mubr.bf16.mxu0 0
        %757 = vmatmul.mubr.bf16.gmra.mrb[0].mxu0 %v622
        %v758 = vpop.f32.mrb[0].mxu0
        %v759 = vadd.f32 %v650, %v758
        %v760 = vpop.f32.mrb[0].mxu0
        %v761 = vpop.f32.mrb[0].mxu0
        %v762 = vadd.f32 %v650, %v761
        %v763 = vpop.f32.mrb[0].mxu0
        %764 = vmatprep.mubr.bf16.mxu0 0
        %765 = vmatmul.mubr.bf16.gmra.mrb[0].mxu0 %v623
        %v766 = vpop.f32.mrb[0].mxu0
        %v767 = vadd.f32 %v650, %v766
        %v768 = vpop.f32.mrb[0].mxu0
        %v769 = vpop.f32.mrb[0].mxu0
        %v770 = vadd.f32 %v650, %v769
        %v771 = vpop.f32.mrb[0].mxu0
        %772 = vmatprep.mubr.bf16.mxu0 0
        %773 = vmatmul.mubr.bf16.gmra.mrb[0].mxu0 %v624
        %v774 = vpop.f32.mrb[0].mxu0
        %v775 = vadd.f32 %v650, %v774
        %v776 = vpop.f32.mrb[0].mxu0
        %v777 = vpop.f32.mrb[0].mxu0
        %v778 = vadd.f32 %v650, %v777
        %v779 = vpop.f32.mrb[0].mxu0
        %780 = vmatprep.mubr.bf16.mxu0 0
        %781 = vmatmul.mubr.bf16.gmra.mrb[0].mxu0 %v625
        %v782 = vpop.f32.mrb[0].mxu0
        %v783 = vadd.f32 %v650, %v782
        %v784 = vpop.f32.mrb[0].mxu0
        %v785 = vpop.f32.mrb[0].mxu0
        %v786 = vadd.f32 %v650, %v785
        %v787 = vpop.f32.mrb[0].mxu0
        %788 = vmatprep.mubr.bf16.mxu0 0
        %789 = vmatmul.mubr.bf16.gmra.mrb[0].mxu0 %v626
        %v790 = vpop.f32.mrb[0].mxu0
        %v791 = vadd.f32 %v650, %v790
        %v792 = vpop.f32.mrb[0].mxu0
        %v793 = vpop.f32.mrb[0].mxu0
        %v794 = vadd.f32 %v650, %v793
        %v795 = vpop.f32.mrb[0].mxu0
        %796 = vmatprep.mubr.bf16.mxu0 0
        %797 = vmatmul.mubr.bf16.gmra.mrb[0].mxu0 %v627
        %v798 = vpop.f32.mrb[0].mxu0
        %v799 = vadd.f32 %v650, %v798
        %v800 = vpop.f32.mrb[0].mxu0
        %v801 = vpop.f32.mrb[0].mxu0
        %v802 = vadd.f32 %v650, %v801
        %v803 = vpop.f32.mrb[0].mxu0
        %804 = vmatprep.mubr.bf16.mxu0 0
        %805 = vmatmul.mubr.bf16.gmra.mrb[0].mxu0 %v628
        %v806 = vpop.f32.mrb[0].mxu0
        %v807 = vadd.f32 %v650, %v806
        %v808 = vpop.f32.mrb[0].mxu0
        %v809 = vpop.f32.mrb[0].mxu0
        %v810 = vadd.f32 %v650, %v809
        %v811 = vpop.f32.mrb[0].mxu0
        %812 = vdwg.mxu0
        %v813 = vmax.f32 %v735, 0.0
        %v814 = vmax.f32 %v738, 0.0
        %v815 = vmax.f32 %v743, 0.0
        %v816 = vmax.f32 %v746, 0.0
        %v817 = vmax.f32 %v751, 0.0
        %v818 = vmax.f32 %v754, 0.0
        %v819 = vmax.f32 %v759, 0.0
        %v820 = vmax.f32 %v762, 0.0
        %v821 = vmax.f32 %v767, 0.0
        %v822 = vmax.f32 %v770, 0.0
        %v823 = vmax.f32 %v775, 0.0
        %v824 = vmax.f32 %v778, 0.0
        %v825 = vmax.f32 %v783, 0.0
        %v826 = vmax.f32 %v786, 0.0
        %v827 = vmax.f32 %v791, 0.0
        %v828 = vmax.f32 %v794, 0.0
        %v829 = vmax.f32 %v799, 0.0
        %v830 = vmax.f32 %v802, 0.0
        %v831 = vmax.f32 %v807, 0.0
        %v832 = vmax.f32 %v810, 0.0
        %v833 = vpack.c.bf16 %v814, %v813
        %v834 = vpack.c.bf16 %v816, %v815
        %v835 = vpack.c.bf16 %v818, %v817
        %v836 = vpack.c.bf16 %v820, %v819
        %v837 = vpack.c.bf16 %v822, %v821
        %v838 = vpack.c.bf16 %v824, %v823
        %v839 = vpack.c.bf16 %v826, %v825
        %v840 = vpack.c.bf16 %v828, %v827
        %v841 = vpack.c.bf16 %v830, %v829
        %v842 = vpack.c.bf16 %v832, %v831
        %v843 = vld [vmem:[%s5] sm:$0xff]
        %v844 = vld [vmem:[%s5 + $0x8] sm:$0xff]
        %v845 = vld [vmem:[%s5 + $0x10] sm:$0xff]
        %v846 = vld [vmem:[%s5 + $0x18] sm:$0xff]
        %v847 = vld [vmem:[%s5 + $0x20] sm:$0xff]
        %v848 = vld [vmem:[%s5 + $0x28] sm:$0xff]
        %v849 = vld [vmem:[%s5 + $0x30] sm:$0xff]
        %v850 = vld [vmem:[%s5 + $0x38] sm:$0xff]
        %v851 = vld [vmem:[%s5 + $0x40] sm:$0xff]
        %v852 = vld [vmem:[%s5 + $0x48] sm:$0xff]
        %v853 = vld [vmem:[%s5 + $0x50] sm:$0xff]
        %v854 = vld [vmem:[%s5 + $0x58] sm:$0xff]
        %v855 = vld [vmem:[%s5 + $0x60] sm:$0xff]
        %v856 = vld [vmem:[%s5 + $0x68] sm:$0xff]
        %v857 = vld [vmem:[%s5 + $0x70] sm:$0xff]
        %v858 = vld [vmem:[%s5 + $0x78] sm:$0xff]
        %v859 = vld [vmem:[%s6] sm:$0x3]
        %v861 = vlaneseq
        %v862 = vshrl.u32 %v861, 7
        %v863 = vsub.s32 0, %v862
        %v864 = vrot.slane %v859, %v863
        %v865 = vlaneseq
        %v866 = vshrl.u32 %v865, 7
        %v867 = vsub.s32 1, %v866
        %v868 = vrot.slane %v859, %v867
        %v887 = vunpack.c.l.b16 %v843
        %v888 = vunpack.c.h.b16 %v843
        %v889 = vunpack.c.l.b16 %v844
        %v890 = vunpack.c.h.b16 %v844
        %v891 = vunpack.c.l.b16 %v845
        %v892 = vunpack.c.h.b16 %v845
        %v893 = vunpack.c.l.b16 %v846
        %v894 = vunpack.c.h.b16 %v846
        %v895 = vunpack.c.l.b16 %v847
        %v896 = vunpack.c.h.b16 %v847
        %v897 = vunpack.c.l.b16 %v848
        %v898 = vunpack.c.h.b16 %v848
        %v899 = vunpack.c.l.b16 %v849
        %v900 = vunpack.c.h.b16 %v849
        %v901 = vunpack.c.l.b16 %v850
        %v902 = vunpack.c.h.b16 %v850
        %v903 = vunpack.c.l.b16 %v851
        %v904 = vunpack.c.h.b16 %v851
        %v905 = vunpack.c.l.b16 %v852
        %v906 = vunpack.c.h.b16 %v852
        %v907 = vunpack.c.l.b16 %v853
        %v908 = vunpack.c.h.b16 %v853
        %v909 = vunpack.c.l.b16 %v854
        %v910 = vunpack.c.h.b16 %v854
        %v911 = vunpack.c.l.b16 %v855
        %v912 = vunpack.c.h.b16 %v855
        %v913 = vunpack.c.l.b16 %v856
        %v914 = vunpack.c.h.b16 %v856
        %v915 = vunpack.c.l.b16 %v857
        %v916 = vunpack.c.h.b16 %v857
        %v917 = vunpack.c.l.b16 %v858
        %v918 = vunpack.c.h.b16 %v858
        %v919 = vpack.c.b16 %v889, %v887
        %v920 = vpack.c.b16 %v890, %v888
        %v921 = vpack.c.b16 %v893, %v891
        %v922 = vpack.c.b16 %v894, %v892
        %v923 = vpack.c.b16 %v897, %v895
        %v924 = vpack.c.b16 %v898, %v896
        %v925 = vpack.c.b16 %v901, %v899
        %v926 = vpack.c.b16 %v902, %v900
        %v927 = vpack.c.b16 %v905, %v903
        %v928 = vpack.c.b16 %v906, %v904
        %v929 = vpack.c.b16 %v909, %v907
        %v930 = vpack.c.b16 %v910, %v908
        %v931 = vpack.c.b16 %v913, %v911
        %v932 = vpack.c.b16 %v914, %v912
        %v933 = vpack.c.b16 %v917, %v915
        %v934 = vpack.c.b16 %v918, %v916
        %951 = vmatprep.subr.bf16.mxu0 %v920
        %952 = vmatpush1.bf16.msra.mxu0 %v919
        %953 = vmatprep.subr.bf16.mxu0 %v922
        %954 = vmatpush1.bf16.msra.mxu0 %v921
        %955 = vmatprep.subr.bf16.mxu0 %v924
        %956 = vmatpush1.bf16.msra.mxu0 %v923
        %957 = vmatprep.subr.bf16.mxu0 %v926
        %958 = vmatpush1.bf16.msra.mxu0 %v925
        %959 = vmatprep.subr.bf16.mxu0 %v928
        %960 = vmatpush1.bf16.msra.mxu0 %v927
        %961 = vmatprep.subr.bf16.mxu0 %v930
        %962 = vmatpush1.bf16.msra.mxu0 %v929
        %963 = vmatprep.subr.bf16.mxu0 %v932
        %964 = vmatpush1.bf16.msra.mxu0 %v931
        %965 = vmatprep.subr.bf16.mxu0 %v934
        %966 = vmatpush1.bf16.msra.mxu0 %v933
        %967 = vmatprep.subr.bf16.mxu0 0
        %968 = vmatpush1.bf16.msra.mxu0 0
        %969 = vmatprep.subr.bf16.mxu0 0
        %970 = vmatpush1.bf16.msra.mxu0 0
        %971 = vmatprep.subr.bf16.mxu0 0
        %972 = vmatpush1.bf16.msra.mxu0 0
        %973 = vmatprep.subr.bf16.mxu0 0
        %974 = vmatpush1.bf16.msra.mxu0 0
        %975 = vmatprep.subr.bf16.mxu0 0
        %976 = vmatpush1.bf16.msra.mxu0 0
        %977 = vmatprep.subr.bf16.mxu0 0
        %978 = vmatpush1.bf16.msra.mxu0 0
        %979 = vmatprep.subr.bf16.mxu0 0
        %980 = vmatpush1.bf16.msra.mxu0 0
        %981 = vmatprep.subr.bf16.mxu0 0
        %982 = vmatpush1.bf16.msra.mxu0 0
        %983 = vmatprep.mubr.bf16.mxu0 0
        %984 = vmatmul.mubr.bf16.gmra.mrb[0].mxu0 %v833
        %v985 = vpop.f32.mrb[0].mxu0
        %v986 = vadd.f32 %v864, %v985
        %v987 = vpop.f32.mrb[0].mxu0
        %v988 = vadd.f32 %v868, %v987
        %v989 = vpop.f32.mrb[0].mxu0
        %v990 = vadd.f32 %v864, %v989
        %v991 = vpop.f32.mrb[0].mxu0
        %v992 = vadd.f32 %v868, %v991
        %993 = vmatprep.mubr.bf16.mxu0 0
        %994 = vmatmul.mubr.bf16.gmra.mrb[0].mxu0 %v834
        %v995 = vpop.f32.mrb[0].mxu0
        %v996 = vadd.f32 %v864, %v995
        %v997 = vpop.f32.mrb[0].mxu0
        %v998 = vadd.f32 %v868, %v997
        %v999 = vpop.f32.mrb[0].mxu0
        %v1000 = vadd.f32 %v864, %v999
        %v1001 = vpop.f32.mrb[0].mxu0
        %v1002 = vadd.f32 %v868, %v1001
        %1003 = vmatprep.mubr.bf16.mxu0 0
        %1004 = vmatmul.mubr.bf16.gmra.mrb[0].mxu0 %v835
        %v1005 = vpop.f32.mrb[0].mxu0
        %v1006 = vadd.f32 %v864, %v1005
        %v1007 = vpop.f32.mrb[0].mxu0
        %v1008 = vadd.f32 %v868, %v1007
        %v1009 = vpop.f32.mrb[0].mxu0
        %v1010 = vadd.f32 %v864, %v1009
        %v1011 = vpop.f32.mrb[0].mxu0
        %v1012 = vadd.f32 %v868, %v1011
        %1013 = vmatprep.mubr.bf16.mxu0 0
        %1014 = vmatmul.mubr.bf16.gmra.mrb[0].mxu0 %v836
        %v1015 = vpop.f32.mrb[0].mxu0
        %v1016 = vadd.f32 %v864, %v1015
        %v1017 = vpop.f32.mrb[0].mxu0
        %v1018 = vadd.f32 %v868, %v1017
        %v1019 = vpop.f32.mrb[0].mxu0
        %v1020 = vadd.f32 %v864, %v1019
        %v1021 = vpop.f32.mrb[0].mxu0
        %v1022 = vadd.f32 %v868, %v1021
        %1023 = vmatprep.mubr.bf16.mxu0 0
        %1024 = vmatmul.mubr.bf16.gmra.mrb[0].mxu0 %v837
        %v1025 = vpop.f32.mrb[0].mxu0
        %v1026 = vadd.f32 %v864, %v1025
        %v1027 = vpop.f32.mrb[0].mxu0
        %v1028 = vadd.f32 %v868, %v1027
        %v1029 = vpop.f32.mrb[0].mxu0
        %v1030 = vadd.f32 %v864, %v1029
        %v1031 = vpop.f32.mrb[0].mxu0
        %v1032 = vadd.f32 %v868, %v1031
        %1033 = vmatprep.mubr.bf16.mxu0 0
        %1034 = vmatmul.mubr.bf16.gmra.mrb[0].mxu0 %v838
        %v1035 = vpop.f32.mrb[0].mxu0
        %v1036 = vadd.f32 %v864, %v1035
        %v1037 = vpop.f32.mrb[0].mxu0
        %v1038 = vadd.f32 %v868, %v1037
        %v1039 = vpop.f32.mrb[0].mxu0
        %v1040 = vadd.f32 %v864, %v1039
        %v1041 = vpop.f32.mrb[0].mxu0
        %v1042 = vadd.f32 %v868, %v1041
        %1043 = vmatprep.mubr.bf16.mxu0 0
        %1044 = vmatmul.mubr.bf16.gmra.mrb[0].mxu0 %v839
        %v1045 = vpop.f32.mrb[0].mxu0
        %v1046 = vadd.f32 %v864, %v1045
        %v1047 = vpop.f32.mrb[0].mxu0
        %v1048 = vadd.f32 %v868, %v1047
        %v1049 = vpop.f32.mrb[0].mxu0
        %v1050 = vadd.f32 %v864, %v1049
        %v1051 = vpop.f32.mrb[0].mxu0
        %v1052 = vadd.f32 %v868, %v1051
        %1053 = vmatprep.mubr.bf16.mxu0 0
        %1054 = vmatmul.mubr.bf16.gmra.mrb[0].mxu0 %v840
        %v1055 = vpop.f32.mrb[0].mxu0
        %v1056 = vadd.f32 %v864, %v1055
        %v1057 = vpop.f32.mrb[0].mxu0
        %v1058 = vadd.f32 %v868, %v1057
        %v1059 = vpop.f32.mrb[0].mxu0
        %v1060 = vadd.f32 %v864, %v1059
        %v1061 = vpop.f32.mrb[0].mxu0
        %v1062 = vadd.f32 %v868, %v1061
        %1063 = vmatprep.mubr.bf16.mxu0 0
        %1064 = vmatmul.mubr.bf16.gmra.mrb[0].mxu0 %v841
        %v1065 = vpop.f32.mrb[0].mxu0
        %v1066 = vadd.f32 %v864, %v1065
        %v1067 = vpop.f32.mrb[0].mxu0
        %v1068 = vadd.f32 %v868, %v1067
        %v1069 = vpop.f32.mrb[0].mxu0
        %v1070 = vadd.f32 %v864, %v1069
        %v1071 = vpop.f32.mrb[0].mxu0
        %v1072 = vadd.f32 %v868, %v1071
        %1073 = vmatprep.mubr.bf16.mxu0 0
        %1074 = vmatmul.mubr.bf16.gmra.mrb[0].mxu0 %v842
        %v1075 = vpop.f32.mrb[0].mxu0
        %v1076 = vadd.f32 %v864, %v1075
        %v1077 = vpop.f32.mrb[0].mxu0
        %v1078 = vadd.f32 %v868, %v1077
        %v1079 = vpop.f32.mrb[0].mxu0
        %v1080 = vadd.f32 %v864, %v1079
        %v1081 = vpop.f32.mrb[0].mxu0
        %v1082 = vadd.f32 %v868, %v1081
        %1083 = vdwg.mxu0
        %v1084 = vmax.f32 %v986, 0.0
        %v1085 = vmax.f32 %v988, 0.0
        %v1086 = vmax.f32 %v990, 0.0
        %v1087 = vmax.f32 %v992, 0.0
        %v1088 = vmax.f32 %v996, 0.0
        %v1089 = vmax.f32 %v998, 0.0
        %v1090 = vmax.f32 %v1000, 0.0
        %v1091 = vmax.f32 %v1002, 0.0
        %v1092 = vmax.f32 %v1006, 0.0
        %v1093 = vmax.f32 %v1008, 0.0
        %v1094 = vmax.f32 %v1010, 0.0
        %v1095 = vmax.f32 %v1012, 0.0
        %v1096 = vmax.f32 %v1016, 0.0
        %v1097 = vmax.f32 %v1018, 0.0
        %v1098 = vmax.f32 %v1020, 0.0
        %v1099 = vmax.f32 %v1022, 0.0
        %v1100 = vmax.f32 %v1026, 0.0
        %v1101 = vmax.f32 %v1028, 0.0
        %v1102 = vmax.f32 %v1030, 0.0
        %v1103 = vmax.f32 %v1032, 0.0
        %v1104 = vmax.f32 %v1036, 0.0
        %v1105 = vmax.f32 %v1038, 0.0
        %v1106 = vmax.f32 %v1040, 0.0
        %v1107 = vmax.f32 %v1042, 0.0
        %v1108 = vmax.f32 %v1046, 0.0
        %v1109 = vmax.f32 %v1048, 0.0
        %v1110 = vmax.f32 %v1050, 0.0
        %v1111 = vmax.f32 %v1052, 0.0
        %v1112 = vmax.f32 %v1056, 0.0
        %v1113 = vmax.f32 %v1058, 0.0
        %v1114 = vmax.f32 %v1060, 0.0
        %v1115 = vmax.f32 %v1062, 0.0
        %v1116 = vmax.f32 %v1066, 0.0
        %v1117 = vmax.f32 %v1068, 0.0
        %v1118 = vmax.f32 %v1070, 0.0
        %v1119 = vmax.f32 %v1072, 0.0
        %v1120 = vmax.f32 %v1076, 0.0
        %v1121 = vmax.f32 %v1078, 0.0
        %v1122 = vmax.f32 %v1080, 0.0
        %v1123 = vmax.f32 %v1082, 0.0
        %v1124 = vpack.c.bf16 %v1086, %v1084
        %v1125 = vpack.c.bf16 %v1087, %v1085
        %v1126 = vpack.c.bf16 %v1090, %v1088
        %v1127 = vpack.c.bf16 %v1091, %v1089
        %v1128 = vpack.c.bf16 %v1094, %v1092
        %v1129 = vpack.c.bf16 %v1095, %v1093
        %v1130 = vpack.c.bf16 %v1098, %v1096
        %v1131 = vpack.c.bf16 %v1099, %v1097
        %v1132 = vpack.c.bf16 %v1102, %v1100
        %v1133 = vpack.c.bf16 %v1103, %v1101
        %v1134 = vpack.c.bf16 %v1106, %v1104
        %v1135 = vpack.c.bf16 %v1107, %v1105
        %v1136 = vpack.c.bf16 %v1110, %v1108
        %v1137 = vpack.c.bf16 %v1111, %v1109
        %v1138 = vpack.c.bf16 %v1114, %v1112
        %v1139 = vpack.c.bf16 %v1115, %v1113
        %v1140 = vpack.c.bf16 %v1118, %v1116
        %v1141 = vpack.c.bf16 %v1119, %v1117
        %v1142 = vpack.c.bf16 %v1122, %v1120
        %v1143 = vpack.c.bf16 %v1123, %v1121
        %v1144 = vld [vmem:[#allocation3] sm:$0xff]
        %v1145 = vld [vmem:[#allocation3 + $0x8] sm:$0xff]
        %v1146 = vld [vmem:[#allocation3 + $0x10] sm:$0xff]
        %v1147 = vld [vmem:[#allocation3 + $0x18] sm:$0xf]
        %v1148 = vld [vmem:[#allocation3 + $0x1c] sm:$0xff]
        %v1149 = vld [vmem:[#allocation3 + $0x24] sm:$0xff]
        %v1150 = vld [vmem:[#allocation3 + $0x2c] sm:$0xff]
        %v1151 = vld [vmem:[#allocation3 + $0x34] sm:$0xf]
        %v1152 = vld [vmem:[#allocation3 + $0x38] sm:$0xff]
        %v1153 = vld [vmem:[#allocation3 + $0x40] sm:$0xff]
        %v1154 = vld [vmem:[#allocation3 + $0x48] sm:$0xff]
        %v1155 = vld [vmem:[#allocation3 + $0x50] sm:$0xf]
        %v1156 = vld [vmem:[#allocation3 + $0x54] sm:$0xff]
        %v1157 = vld [vmem:[#allocation3 + $0x5c] sm:$0xff]
        %v1158 = vld [vmem:[#allocation3 + $0x64] sm:$0xff]
        %v1159 = vld [vmem:[#allocation3 + $0x6c] sm:$0xf]
        %v1160 = vld [vmem:[#allocation3 + $0x70] sm:$0xff]
        %v1161 = vld [vmem:[#allocation3 + $0x78] sm:$0xff]
        %v1162 = vld [vmem:[#allocation3 + $0x80] sm:$0xff]
        %v1163 = vld [vmem:[#allocation3 + $0x88] sm:$0xf]
        %v1164 = vld [vmem:[#allocation3 + $0x8c] sm:$0xff]
        %v1165 = vld [vmem:[#allocation3 + $0x94] sm:$0xff]
        %v1166 = vld [vmem:[#allocation3 + $0x9c] sm:$0xff]
        %v1167 = vld [vmem:[#allocation3 + $0xa4] sm:$0xf]
        %v1168 = vld [vmem:[#allocation3 + $0xa8] sm:$0xff]
        %v1169 = vld [vmem:[#allocation3 + $0xb0] sm:$0xff]
        %v1170 = vld [vmem:[#allocation3 + $0xb8] sm:$0xff]
        %v1171 = vld [vmem:[#allocation3 + $0xc0] sm:$0xf]
        %v1172 = vld [vmem:[#allocation3 + $0xc4] sm:$0xff]
        %v1173 = vld [vmem:[#allocation3 + $0xcc] sm:$0xff]
        %v1174 = vld [vmem:[#allocation3 + $0xd4] sm:$0xff]
        %v1175 = vld [vmem:[#allocation3 + $0xdc] sm:$0xf]
        %v1176 = vld [vmem:[#allocation3 + $0xe0] sm:$0xff]
        %v1177 = vld [vmem:[#allocation3 + $0xe8] sm:$0xff]
        %v1178 = vld [vmem:[#allocation3 + $0xf0] sm:$0xff]
        %v1179 = vld [vmem:[#allocation3 + $0xf8] sm:$0xf]
        %v1180 = vld [vmem:[#allocation3 + $0xfc] sm:$0xff]
        %v1181 = vld [vmem:[#allocation3 + $0x104] sm:$0xff]
        %v1182 = vld [vmem:[#allocation3 + $0x10c] sm:$0xff]
        %v1183 = vld [vmem:[#allocation3 + $0x114] sm:$0xf]
        %v1184 = vld [vmem:[#allocation3 + $0x118] sm:$0xff]
        %v1185 = vld [vmem:[#allocation3 + $0x120] sm:$0xff]
        %v1186 = vld [vmem:[#allocation3 + $0x128] sm:$0xff]
        %v1187 = vld [vmem:[#allocation3 + $0x130] sm:$0xf]
        %v1188 = vld [vmem:[#allocation3 + $0x134] sm:$0xff]
        %v1189 = vld [vmem:[#allocation3 + $0x13c] sm:$0xff]
        %v1190 = vld [vmem:[#allocation3 + $0x144] sm:$0xff]
        %v1191 = vld [vmem:[#allocation3 + $0x14c] sm:$0xf]
        %v1192 = vld [vmem:[#allocation3 + $0x150] sm:$0xff]
        %v1193 = vld [vmem:[#allocation3 + $0x158] sm:$0xff]
        %v1194 = vld [vmem:[#allocation3 + $0x160] sm:$0xff]
        %v1195 = vld [vmem:[#allocation3 + $0x168] sm:$0xf]
        %v1196 = vld [vmem:[#allocation3 + $0x16c] sm:$0xff]
        %v1197 = vld [vmem:[#allocation3 + $0x174] sm:$0xff]
        %v1198 = vld [vmem:[#allocation3 + $0x17c] sm:$0xff]
        %v1199 = vld [vmem:[#allocation3 + $0x184] sm:$0xf]
        %v1200 = vld [vmem:[#allocation3 + $0x188] sm:$0xff]
        %v1201 = vld [vmem:[#allocation3 + $0x190] sm:$0xff]
        %v1202 = vld [vmem:[#allocation3 + $0x198] sm:$0xff]
        %v1203 = vld [vmem:[#allocation3 + $0x1a0] sm:$0xf]
        %v1204 = vld [vmem:[#allocation3 + $0x1a4] sm:$0xff]
        %v1205 = vld [vmem:[#allocation3 + $0x1ac] sm:$0xff]
        %v1206 = vld [vmem:[#allocation3 + $0x1b4] sm:$0xff]
        %v1207 = vld [vmem:[#allocation3 + $0x1bc] sm:$0xf]
        %v1208 = vld [vmem:[#allocation3 + $0x1c0] sm:$0xff]
        %v1209 = vld [vmem:[#allocation3 + $0x1c8] sm:$0xff]
        %v1210 = vld [vmem:[#allocation3 + $0x1d0] sm:$0xff]
        %v1211 = vld [vmem:[#allocation3 + $0x1d8] sm:$0xf]
        %v1212 = vld [vmem:[#allocation3 + $0x1dc] sm:$0xff]
        %v1213 = vld [vmem:[#allocation3 + $0x1e4] sm:$0xff]
        %v1214 = vld [vmem:[#allocation3 + $0x1ec] sm:$0xff]
        %v1215 = vld [vmem:[#allocation3 + $0x1f4] sm:$0xf]
        %v1216 = vld [vmem:[#allocation3 + $0x1f8] sm:$0xff]
        %v1217 = vld [vmem:[#allocation3 + $0x200] sm:$0xff]
        %v1218 = vld [vmem:[#allocation3 + $0x208] sm:$0xff]
        %v1219 = vld [vmem:[#allocation3 + $0x210] sm:$0xf]
        %v1220 = vld [vmem:[#allocation3 + $0x214] sm:$0xff]
        %v1221 = vld [vmem:[#allocation3 + $0x21c] sm:$0xff]
        %v1222 = vld [vmem:[#allocation3 + $0x224] sm:$0xff]
        %v1223 = vld [vmem:[#allocation3 + $0x22c] sm:$0xf]
        %v1224 = vld [vmem:[#allocation3 + $0x230] sm:$0xff]
        %v1225 = vld [vmem:[#allocation3 + $0x238] sm:$0xff]
        %v1226 = vld [vmem:[#allocation3 + $0x240] sm:$0xff]
        %v1227 = vld [vmem:[#allocation3 + $0x248] sm:$0xf]
        %v1228 = vld [vmem:[#allocation3 + $0x24c] sm:$0xff]
        %v1229 = vld [vmem:[#allocation3 + $0x254] sm:$0xff]
        %v1230 = vld [vmem:[#allocation3 + $0x25c] sm:$0xff]
        %v1231 = vld [vmem:[#allocation3 + $0x264] sm:$0xf]
        %v1232 = vld [vmem:[#allocation3 + $0x268] sm:$0xff]
        %v1233 = vld [vmem:[#allocation3 + $0x270] sm:$0xff]
        %v1234 = vld [vmem:[#allocation3 + $0x278] sm:$0xff]
        %v1235 = vld [vmem:[#allocation3 + $0x280] sm:$0xf]
        %v1236 = vld [vmem:[#allocation3 + $0x284] sm:$0xff]
        %v1237 = vld [vmem:[#allocation3 + $0x28c] sm:$0xff]
        %v1238 = vld [vmem:[#allocation3 + $0x294] sm:$0xff]
        %v1239 = vld [vmem:[#allocation3 + $0x29c] sm:$0xf]
        %v1240 = vld [vmem:[#allocation3 + $0x2a0] sm:$0xff]
        %v1241 = vld [vmem:[#allocation3 + $0x2a8] sm:$0xff]
        %v1242 = vld [vmem:[#allocation3 + $0x2b0] sm:$0xff]
        %v1243 = vld [vmem:[#allocation3 + $0x2b8] sm:$0xf]
        %v1244 = vld [vmem:[#allocation3 + $0x2bc] sm:$0xff]
        %v1245 = vld [vmem:[#allocation3 + $0x2c4] sm:$0xff]
        %v1246 = vld [vmem:[#allocation3 + $0x2cc] sm:$0xff]
        %v1247 = vld [vmem:[#allocation3 + $0x2d4] sm:$0xf]
        %v1248 = vld [vmem:[#allocation3 + $0x2d8] sm:$0xff]
        %v1249 = vld [vmem:[#allocation3 + $0x2e0] sm:$0xff]
        %v1250 = vld [vmem:[#allocation3 + $0x2e8] sm:$0xff]
        %v1251 = vld [vmem:[#allocation3 + $0x2f0] sm:$0xf]
        %v1252 = vld [vmem:[#allocation3 + $0x2f4] sm:$0xff]
        %v1253 = vld [vmem:[#allocation3 + $0x2fc] sm:$0xff]
        %v1254 = vld [vmem:[#allocation3 + $0x304] sm:$0xff]
        %v1255 = vld [vmem:[#allocation3 + $0x30c] sm:$0xf]
        %v1256 = vld [vmem:[#allocation3 + $0x310] sm:$0xff]
        %v1257 = vld [vmem:[#allocation3 + $0x318] sm:$0xff]
        %v1258 = vld [vmem:[#allocation3 + $0x320] sm:$0xff]
        %v1259 = vld [vmem:[#allocation3 + $0x328] sm:$0xf]
        %v1260 = vld [vmem:[#allocation3 + $0x32c] sm:$0xff]
        %v1261 = vld [vmem:[#allocation3 + $0x334] sm:$0xff]
        %v1262 = vld [vmem:[#allocation3 + $0x33c] sm:$0xff]
        %v1263 = vld [vmem:[#allocation3 + $0x344] sm:$0xf]
        %v1264 = vld [vmem:[#allocation3 + $0x348] sm:$0xff]
        %v1265 = vld [vmem:[#allocation3 + $0x350] sm:$0xff]
        %v1266 = vld [vmem:[#allocation3 + $0x358] sm:$0xff]
        %v1267 = vld [vmem:[#allocation3 + $0x360] sm:$0xf]
        %v1268 = vld [vmem:[#allocation3 + $0x364] sm:$0xff]
        %v1269 = vld [vmem:[#allocation3 + $0x36c] sm:$0xff]
        %v1270 = vld [vmem:[#allocation3 + $0x374] sm:$0xff]
        %v1271 = vld [vmem:[#allocation3 + $0x37c] sm:$0xf]
        %v1272 = vld [vmem:[%s8] sm:$0xff]
        %v1274 = vlaneseq
        %v1275 = vshrl.u32 %v1274, 7
        %v1276 = vsub.s32 0, %v1275
        %v1277 = vrot.slane %v1272, %v1276
        %v1278 = vlaneseq
        %v1279 = vshrl.u32 %v1278, 7
        %v1280 = vsub.s32 1, %v1279
        %v1281 = vrot.slane %v1272, %v1280
        %v1282 = vlaneseq
        %v1283 = vshrl.u32 %v1282, 7
        %v1284 = vsub.s32 2, %v1283
        %v1285 = vrot.slane %v1272, %v1284
        %v1286 = vlaneseq
        %v1287 = vshrl.u32 %v1286, 7
        %v1288 = vsub.s32 3, %v1287
        %v1289 = vrot.slane %v1272, %v1288
        %v1290 = vlaneseq
        %v1291 = vshrl.u32 %v1290, 7
        %v1292 = vsub.s32 4, %v1291
        %v1293 = vrot.slane %v1272, %v1292
        %v1294 = vlaneseq
        %v1295 = vshrl.u32 %v1294, 7
        %v1296 = vsub.s32 5, %v1295
        %v1297 = vrot.slane %v1272, %v1296
        %v1298 = vlaneseq
        %v1299 = vshrl.u32 %v1298, 7
        %v1300 = vsub.s32 6, %v1299
        %v1301 = vrot.slane %v1272, %v1300
        %v1437 = vunpack.c.l.b16 %v1144
        %v1438 = vunpack.c.h.b16 %v1144
        %v1439 = vunpack.c.l.b16 %v1145
        %v1440 = vunpack.c.h.b16 %v1145
        %v1441 = vunpack.c.l.b16 %v1146
        %v1442 = vunpack.c.h.b16 %v1146
        %v1443 = vunpack.c.l.b16 %v1147
        %v1444 = vunpack.c.l.b16 %v1148
        %v1445 = vunpack.c.h.b16 %v1148
        %v1446 = vunpack.c.l.b16 %v1149
        %v1447 = vunpack.c.h.b16 %v1149
        %v1448 = vunpack.c.l.b16 %v1150
        %v1449 = vunpack.c.h.b16 %v1150
        %v1450 = vunpack.c.l.b16 %v1151
        %v1451 = vunpack.c.l.b16 %v1152
        %v1452 = vunpack.c.h.b16 %v1152
        %v1453 = vunpack.c.l.b16 %v1153
        %v1454 = vunpack.c.h.b16 %v1153
        %v1455 = vunpack.c.l.b16 %v1154
        %v1456 = vunpack.c.h.b16 %v1154
        %v1457 = vunpack.c.l.b16 %v1155
        %v1458 = vunpack.c.l.b16 %v1156
        %v1459 = vunpack.c.h.b16 %v1156
        %v1460 = vunpack.c.l.b16 %v1157
        %v1461 = vunpack.c.h.b16 %v1157
        %v1462 = vunpack.c.l.b16 %v1158
        %v1463 = vunpack.c.h.b16 %v1158
        %v1464 = vunpack.c.l.b16 %v1159
        %v1465 = vunpack.c.l.b16 %v1160
        %v1466 = vunpack.c.h.b16 %v1160
        %v1467 = vunpack.c.l.b16 %v1161
        %v1468 = vunpack.c.h.b16 %v1161
        %v1469 = vunpack.c.l.b16 %v1162
        %v1470 = vunpack.c.h.b16 %v1162
        %v1471 = vunpack.c.l.b16 %v1163
        %v1472 = vunpack.c.l.b16 %v1164
        %v1473 = vunpack.c.h.b16 %v1164
        %v1474 = vunpack.c.l.b16 %v1165
        %v1475 = vunpack.c.h.b16 %v1165
        %v1476 = vunpack.c.l.b16 %v1166
        %v1477 = vunpack.c.h.b16 %v1166
        %v1478 = vunpack.c.l.b16 %v1167
        %v1479 = vunpack.c.l.b16 %v1168
        %v1480 = vunpack.c.h.b16 %v1168
        %v1481 = vunpack.c.l.b16 %v1169
        %v1482 = vunpack.c.h.b16 %v1169
        %v1483 = vunpack.c.l.b16 %v1170
        %v1484 = vunpack.c.h.b16 %v1170
        %v1485 = vunpack.c.l.b16 %v1171
        %v1486 = vunpack.c.l.b16 %v1172
        %v1487 = vunpack.c.h.b16 %v1172
        %v1488 = vunpack.c.l.b16 %v1173
        %v1489 = vunpack.c.h.b16 %v1173
        %v1490 = vunpack.c.l.b16 %v1174
        %v1491 = vunpack.c.h.b16 %v1174
        %v1492 = vunpack.c.l.b16 %v1175
        %v1493 = vunpack.c.l.b16 %v1176
        %v1494 = vunpack.c.h.b16 %v1176
        %v1495 = vunpack.c.l.b16 %v1177
        %v1496 = vunpack.c.h.b16 %v1177
        %v1497 = vunpack.c.l.b16 %v1178
        %v1498 = vunpack.c.h.b16 %v1178
        %v1499 = vunpack.c.l.b16 %v1179
        %v1500 = vunpack.c.l.b16 %v1180
        %v1501 = vunpack.c.h.b16 %v1180
        %v1502 = vunpack.c.l.b16 %v1181
        %v1503 = vunpack.c.h.b16 %v1181
        %v1504 = vunpack.c.l.b16 %v1182
        %v1505 = vunpack.c.h.b16 %v1182
        %v1506 = vunpack.c.l.b16 %v1183
        %v1507 = vunpack.c.l.b16 %v1184
        %v1508 = vunpack.c.h.b16 %v1184
        %v1509 = vunpack.c.l.b16 %v1185
        %v1510 = vunpack.c.h.b16 %v1185
        %v1511 = vunpack.c.l.b16 %v1186
        %v1512 = vunpack.c.h.b16 %v1186
        %v1513 = vunpack.c.l.b16 %v1187
        %v1514 = vunpack.c.l.b16 %v1188
        %v1515 = vunpack.c.h.b16 %v1188
        %v1516 = vunpack.c.l.b16 %v1189
        %v1517 = vunpack.c.h.b16 %v1189
        %v1518 = vunpack.c.l.b16 %v1190
        %v1519 = vunpack.c.h.b16 %v1190
        %v1520 = vunpack.c.l.b16 %v1191
        %v1521 = vunpack.c.l.b16 %v1192
        %v1522 = vunpack.c.h.b16 %v1192
        %v1523 = vunpack.c.l.b16 %v1193
        %v1524 = vunpack.c.h.b16 %v1193
        %v1525 = vunpack.c.l.b16 %v1194
        %v1526 = vunpack.c.h.b16 %v1194
        %v1527 = vunpack.c.l.b16 %v1195
        %v1528 = vunpack.c.l.b16 %v1196
        %v1529 = vunpack.c.h.b16 %v1196
        %v1530 = vunpack.c.l.b16 %v1197
        %v1531 = vunpack.c.h.b16 %v1197
        %v1532 = vunpack.c.l.b16 %v1198
        %v1533 = vunpack.c.h.b16 %v1198
        %v1534 = vunpack.c.l.b16 %v1199
        %v1535 = vunpack.c.l.b16 %v1200
        %v1536 = vunpack.c.h.b16 %v1200
        %v1537 = vunpack.c.l.b16 %v1201
        %v1538 = vunpack.c.h.b16 %v1201
        %v1539 = vunpack.c.l.b16 %v1202
        %v1540 = vunpack.c.h.b16 %v1202
        %v1541 = vunpack.c.l.b16 %v1203
        %v1542 = vunpack.c.l.b16 %v1204
        %v1543 = vunpack.c.h.b16 %v1204
        %v1544 = vunpack.c.l.b16 %v1205
        %v1545 = vunpack.c.h.b16 %v1205
        %v1546 = vunpack.c.l.b16 %v1206
        %v1547 = vunpack.c.h.b16 %v1206
        %v1548 = vunpack.c.l.b16 %v1207
        %v1549 = vunpack.c.l.b16 %v1208
        %v1550 = vunpack.c.h.b16 %v1208
        %v1551 = vunpack.c.l.b16 %v1209
        %v1552 = vunpack.c.h.b16 %v1209
        %v1553 = vunpack.c.l.b16 %v1210
        %v1554 = vunpack.c.h.b16 %v1210
        %v1555 = vunpack.c.l.b16 %v1211
        %v1556 = vunpack.c.l.b16 %v1212
        %v1557 = vunpack.c.h.b16 %v1212
        %v1558 = vunpack.c.l.b16 %v1213
        %v1559 = vunpack.c.h.b16 %v1213
        %v1560 = vunpack.c.l.b16 %v1214
        %v1561 = vunpack.c.h.b16 %v1214
        %v1562 = vunpack.c.l.b16 %v1215
        %v1563 = vunpack.c.l.b16 %v1216
        %v1564 = vunpack.c.h.b16 %v1216
        %v1565 = vunpack.c.l.b16 %v1217
        %v1566 = vunpack.c.h.b16 %v1217
        %v1567 = vunpack.c.l.b16 %v1218
        %v1568 = vunpack.c.h.b16 %v1218
        %v1569 = vunpack.c.l.b16 %v1219
        %v1570 = vunpack.c.l.b16 %v1220
        %v1571 = vunpack.c.h.b16 %v1220
        %v1572 = vunpack.c.l.b16 %v1221
        %v1573 = vunpack.c.h.b16 %v1221
        %v1574 = vunpack.c.l.b16 %v1222
        %v1575 = vunpack.c.h.b16 %v1222
        %v1576 = vunpack.c.l.b16 %v1223
        %v1577 = vunpack.c.l.b16 %v1224
        %v1578 = vunpack.c.h.b16 %v1224
        %v1579 = vunpack.c.l.b16 %v1225
        %v1580 = vunpack.c.h.b16 %v1225
        %v1581 = vunpack.c.l.b16 %v1226
        %v1582 = vunpack.c.h.b16 %v1226
        %v1583 = vunpack.c.l.b16 %v1227
        %v1584 = vunpack.c.l.b16 %v1228
        %v1585 = vunpack.c.h.b16 %v1228
        %v1586 = vunpack.c.l.b16 %v1229
        %v1587 = vunpack.c.h.b16 %v1229
        %v1588 = vunpack.c.l.b16 %v1230
        %v1589 = vunpack.c.h.b16 %v1230
        %v1590 = vunpack.c.l.b16 %v1231
        %v1591 = vunpack.c.l.b16 %v1232
        %v1592 = vunpack.c.h.b16 %v1232
        %v1593 = vunpack.c.l.b16 %v1233
        %v1594 = vunpack.c.h.b16 %v1233
        %v1595 = vunpack.c.l.b16 %v1234
        %v1596 = vunpack.c.h.b16 %v1234
        %v1597 = vunpack.c.l.b16 %v1235
        %v1598 = vunpack.c.l.b16 %v1236
        %v1599 = vunpack.c.h.b16 %v1236
        %v1600 = vunpack.c.l.b16 %v1237
        %v1601 = vunpack.c.h.b16 %v1237
        %v1602 = vunpack.c.l.b16 %v1238
        %v1603 = vunpack.c.h.b16 %v1238
        %v1604 = vunpack.c.l.b16 %v1239
        %v1605 = vunpack.c.l.b16 %v1240
        %v1606 = vunpack.c.h.b16 %v1240
        %v1607 = vunpack.c.l.b16 %v1241
        %v1608 = vunpack.c.h.b16 %v1241
        %v1609 = vunpack.c.l.b16 %v1242
        %v1610 = vunpack.c.h.b16 %v1242
        %v1611 = vunpack.c.l.b16 %v1243
        %v1612 = vunpack.c.l.b16 %v1244
        %v1613 = vunpack.c.h.b16 %v1244
        %v1614 = vunpack.c.l.b16 %v1245
        %v1615 = vunpack.c.h.b16 %v1245
        %v1616 = vunpack.c.l.b16 %v1246
        %v1617 = vunpack.c.h.b16 %v1246
        %v1618 = vunpack.c.l.b16 %v1247
        %v1619 = vunpack.c.l.b16 %v1248
        %v1620 = vunpack.c.h.b16 %v1248
        %v1621 = vunpack.c.l.b16 %v1249
        %v1622 = vunpack.c.h.b16 %v1249
        %v1623 = vunpack.c.l.b16 %v1250
        %v1624 = vunpack.c.h.b16 %v1250
        %v1625 = vunpack.c.l.b16 %v1251
        %v1626 = vunpack.c.l.b16 %v1252
        %v1627 = vunpack.c.h.b16 %v1252
        %v1628 = vunpack.c.l.b16 %v1253
        %v1629 = vunpack.c.h.b16 %v1253
        %v1630 = vunpack.c.l.b16 %v1254
        %v1631 = vunpack.c.h.b16 %v1254
        %v1632 = vunpack.c.l.b16 %v1255
        %v1633 = vunpack.c.l.b16 %v1256
        %v1634 = vunpack.c.h.b16 %v1256
        %v1635 = vunpack.c.l.b16 %v1257
        %v1636 = vunpack.c.h.b16 %v1257
        %v1637 = vunpack.c.l.b16 %v1258
        %v1638 = vunpack.c.h.b16 %v1258
        %v1639 = vunpack.c.l.b16 %v1259
        %v1640 = vunpack.c.l.b16 %v1260
        %v1641 = vunpack.c.h.b16 %v1260
        %v1642 = vunpack.c.l.b16 %v1261
        %v1643 = vunpack.c.h.b16 %v1261
        %v1644 = vunpack.c.l.b16 %v1262
        %v1645 = vunpack.c.h.b16 %v1262
        %v1646 = vunpack.c.l.b16 %v1263
        %v1647 = vunpack.c.l.b16 %v1264
        %v1648 = vunpack.c.h.b16 %v1264
        %v1649 = vunpack.c.l.b16 %v1265
        %v1650 = vunpack.c.h.b16 %v1265
        %v1651 = vunpack.c.l.b16 %v1266
        %v1652 = vunpack.c.h.b16 %v1266
        %v1653 = vunpack.c.l.b16 %v1267
        %v1654 = vunpack.c.l.b16 %v1268
        %v1655 = vunpack.c.h.b16 %v1268
        %v1656 = vunpack.c.l.b16 %v1269
        %v1657 = vunpack.c.h.b16 %v1269
        %v1658 = vunpack.c.l.b16 %v1270
        %v1659 = vunpack.c.h.b16 %v1270
        %v1660 = vunpack.c.l.b16 %v1271
        %v1661 = vpack.c.b16 %v1444, %v1437
        %v1662 = vpack.c.b16 %v1445, %v1438
        %v1663 = vpack.c.b16 %v1446, %v1439
        %v1664 = vpack.c.b16 %v1447, %v1440
        %v1665 = vpack.c.b16 %v1448, %v1441
        %v1666 = vpack.c.b16 %v1449, %v1442
        %v1667 = vpack.c.b16 %v1450, %v1443
        %v1668 = vpack.c.b16 %v1458, %v1451
        %v1669 = vpack.c.b16 %v1459, %v1452
        %v1670 = vpack.c.b16 %v1460, %v1453
        %v1671 = vpack.c.b16 %v1461, %v1454
        %v1672 = vpack.c.b16 %v1462, %v1455
        %v1673 = vpack.c.b16 %v1463, %v1456
        %v1674 = vpack.c.b16 %v1464, %v1457
        %v1675 = vpack.c.b16 %v1472, %v1465
        %v1676 = vpack.c.b16 %v1473, %v1466
        %v1677 = vpack.c.b16 %v1474, %v1467
        %v1678 = vpack.c.b16 %v1475, %v1468
        %v1679 = vpack.c.b16 %v1476, %v1469
        %v1680 = vpack.c.b16 %v1477, %v1470
        %v1681 = vpack.c.b16 %v1478, %v1471
        %v1682 = vpack.c.b16 %v1486, %v1479
        %v1683 = vpack.c.b16 %v1487, %v1480
        %v1684 = vpack.c.b16 %v1488, %v1481
        %v1685 = vpack.c.b16 %v1489, %v1482
        %v1686 = vpack.c.b16 %v1490, %v1483
        %v1687 = vpack.c.b16 %v1491, %v1484
        %v1688 = vpack.c.b16 %v1492, %v1485
        %v1689 = vpack.c.b16 %v1500, %v1493
        %v1690 = vpack.c.b16 %v1501, %v1494
        %v1691 = vpack.c.b16 %v1502, %v1495
        %v1692 = vpack.c.b16 %v1503, %v1496
        %v1693 = vpack.c.b16 %v1504, %v1497
        %v1694 = vpack.c.b16 %v1505, %v1498
        %v1695 = vpack.c.b16 %v1506, %v1499
        %v1696 = vpack.c.b16 %v1514, %v1507
        %v1697 = vpack.c.b16 %v1515, %v1508
        %v1698 = vpack.c.b16 %v1516, %v1509
        %v1699 = vpack.c.b16 %v1517, %v1510
        %v1700 = vpack.c.b16 %v1518, %v1511
        %v1701 = vpack.c.b16 %v1519, %v1512
        %v1702 = vpack.c.b16 %v1520, %v1513
        %v1703 = vpack.c.b16 %v1528, %v1521
        %v1704 = vpack.c.b16 %v1529, %v1522
        %v1705 = vpack.c.b16 %v1530, %v1523
        %v1706 = vpack.c.b16 %v1531, %v1524
        %v1707 = vpack.c.b16 %v1532, %v1525
        %v1708 = vpack.c.b16 %v1533, %v1526
        %v1709 = vpack.c.b16 %v1534, %v1527
        %v1710 = vpack.c.b16 %v1542, %v1535
        %v1711 = vpack.c.b16 %v1543, %v1536
        %v1712 = vpack.c.b16 %v1544, %v1537
        %v1713 = vpack.c.b16 %v1545, %v1538
        %v1714 = vpack.c.b16 %v1546, %v1539
        %v1715 = vpack.c.b16 %v1547, %v1540
        %v1716 = vpack.c.b16 %v1548, %v1541
        %v1717 = vpack.c.b16 %v1556, %v1549
        %v1718 = vpack.c.b16 %v1557, %v1550
        %v1719 = vpack.c.b16 %v1558, %v1551
        %v1720 = vpack.c.b16 %v1559, %v1552
        %v1721 = vpack.c.b16 %v1560, %v1553
        %v1722 = vpack.c.b16 %v1561, %v1554
        %v1723 = vpack.c.b16 %v1562, %v1555
        %v1724 = vpack.c.b16 %v1570, %v1563
        %v1725 = vpack.c.b16 %v1571, %v1564
        %v1726 = vpack.c.b16 %v1572, %v1565
        %v1727 = vpack.c.b16 %v1573, %v1566
        %v1728 = vpack.c.b16 %v1574, %v1567
        %v1729 = vpack.c.b16 %v1575, %v1568
        %v1730 = vpack.c.b16 %v1576, %v1569
        %v1731 = vpack.c.b16 %v1584, %v1577
        %v1732 = vpack.c.b16 %v1585, %v1578
        %v1733 = vpack.c.b16 %v1586, %v1579
        %v1734 = vpack.c.b16 %v1587, %v1580
        %v1735 = vpack.c.b16 %v1588, %v1581
        %v1736 = vpack.c.b16 %v1589, %v1582
        %v1737 = vpack.c.b16 %v1590, %v1583
        %v1738 = vpack.c.b16 %v1598, %v1591
        %v1739 = vpack.c.b16 %v1599, %v1592
        %v1740 = vpack.c.b16 %v1600, %v1593
        %v1741 = vpack.c.b16 %v1601, %v1594
        %v1742 = vpack.c.b16 %v1602, %v1595
        %v1743 = vpack.c.b16 %v1603, %v1596
        %v1744 = vpack.c.b16 %v1604, %v1597
        %v1745 = vpack.c.b16 %v1612, %v1605
        %v1746 = vpack.c.b16 %v1613, %v1606
        %v1747 = vpack.c.b16 %v1614, %v1607
        %v1748 = vpack.c.b16 %v1615, %v1608
        %v1749 = vpack.c.b16 %v1616, %v1609
        %v1750 = vpack.c.b16 %v1617, %v1610
        %v1751 = vpack.c.b16 %v1618, %v1611
        %v1752 = vpack.c.b16 %v1626, %v1619
        %v1753 = vpack.c.b16 %v1627, %v1620
        %v1754 = vpack.c.b16 %v1628, %v1621
        %v1755 = vpack.c.b16 %v1629, %v1622
        %v1756 = vpack.c.b16 %v1630, %v1623
        %v1757 = vpack.c.b16 %v1631, %v1624
        %v1758 = vpack.c.b16 %v1632, %v1625
        %v1759 = vpack.c.b16 %v1640, %v1633
        %v1760 = vpack.c.b16 %v1641, %v1634
        %v1761 = vpack.c.b16 %v1642, %v1635
        %v1762 = vpack.c.b16 %v1643, %v1636
        %v1763 = vpack.c.b16 %v1644, %v1637
        %v1764 = vpack.c.b16 %v1645, %v1638
        %v1765 = vpack.c.b16 %v1646, %v1639
        %v1766 = vpack.c.b16 %v1654, %v1647
        %v1767 = vpack.c.b16 %v1655, %v1648
        %v1768 = vpack.c.b16 %v1656, %v1649
        %v1769 = vpack.c.b16 %v1657, %v1650
        %v1770 = vpack.c.b16 %v1658, %v1651
        %v1771 = vpack.c.b16 %v1659, %v1652
        %v1772 = vpack.c.b16 %v1660, %v1653
        %1885 = vmatprep.subr.bf16.mxu0 %v1662
        %1886 = vmatpush1.bf16.msra.mxu0 %v1661
        %1887 = vmatprep.subr.bf16.mxu0 %v1669
        %1888 = vmatpush1.bf16.msra.mxu0 %v1668
        %1889 = vmatprep.subr.bf16.mxu0 %v1676
        %1890 = vmatpush1.bf16.msra.mxu0 %v1675
        %1891 = vmatprep.subr.bf16.mxu0 %v1683
        %1892 = vmatpush1.bf16.msra.mxu0 %v1682
        %1893 = vmatprep.subr.bf16.mxu0 %v1690
        %1894 = vmatpush1.bf16.msra.mxu0 %v1689
        %1895 = vmatprep.subr.bf16.mxu0 %v1697
        %1896 = vmatpush1.bf16.msra.mxu0 %v1696
        %1897 = vmatprep.subr.bf16.mxu0 %v1704
        %1898 = vmatpush1.bf16.msra.mxu0 %v1703
        %1899 = vmatprep.subr.bf16.mxu0 %v1711
        %1900 = vmatpush1.bf16.msra.mxu0 %v1710
        %1901 = vmatprep.subr.bf16.mxu0 %v1718
        %1902 = vmatpush1.bf16.msra.mxu0 %v1717
        %1903 = vmatprep.subr.bf16.mxu0 %v1725
        %1904 = vmatpush1.bf16.msra.mxu0 %v1724
        %1905 = vmatprep.subr.bf16.mxu0 %v1732
        %1906 = vmatpush1.bf16.msra.mxu0 %v1731
        %1907 = vmatprep.subr.bf16.mxu0 %v1739
        %1908 = vmatpush1.bf16.msra.mxu0 %v1738
        %1909 = vmatprep.subr.bf16.mxu0 %v1746
        %1910 = vmatpush1.bf16.msra.mxu0 %v1745
        %1911 = vmatprep.subr.bf16.mxu0 %v1753
        %1912 = vmatpush1.bf16.msra.mxu0 %v1752
        %1913 = vmatprep.subr.bf16.mxu0 %v1760
        %1914 = vmatpush1.bf16.msra.mxu0 %v1759
        %1915 = vmatprep.subr.bf16.mxu0 %v1767
        %1916 = vmatpush1.bf16.msra.mxu0 %v1766
        %1917 = vmatprep.mubr.bf16.mxu0 %v1125
        %1918 = vmatmul.mubr.bf16.gmra.mrb[0].mxu0 %v1124
        %v1919 = vpop.f32.mrb[0].mxu0
        %v1920 = vadd.f32 %v1277, %v1919
        %v1921 = vpop.f32.mrb[0].mxu0
        %v1922 = vadd.f32 %v1281, %v1921
        %v1923 = vpop.f32.mrb[0].mxu0
        %v1924 = vadd.f32 %v1277, %v1923
        %v1925 = vpop.f32.mrb[0].mxu0
        %v1926 = vadd.f32 %v1281, %v1925
        %1927 = vmatprep.mubr.bf16.mxu0 %v1127
        %1928 = vmatmul.mubr.bf16.gmra.mrb[0].mxu0 %v1126
        %v1929 = vpop.f32.mrb[0].mxu0
        %v1930 = vadd.f32 %v1277, %v1929
        %v1931 = vpop.f32.mrb[0].mxu0
        %v1932 = vadd.f32 %v1281, %v1931
        %v1933 = vpop.f32.mrb[0].mxu0
        %v1934 = vadd.f32 %v1277, %v1933
        %v1935 = vpop.f32.mrb[0].mxu0
        %v1936 = vadd.f32 %v1281, %v1935
        %1937 = vmatprep.mubr.bf16.mxu0 %v1129
        %1938 = vmatmul.mubr.bf16.gmra.mrb[0].mxu0 %v1128
        %v1939 = vpop.f32.mrb[0].mxu0
        %v1940 = vadd.f32 %v1277, %v1939
        %v1941 = vpop.f32.mrb[0].mxu0
        %v1942 = vadd.f32 %v1281, %v1941
        %v1943 = vpop.f32.mrb[0].mxu0
        %v1944 = vadd.f32 %v1277, %v1943
        %v1945 = vpop.f32.mrb[0].mxu0
        %v1946 = vadd.f32 %v1281, %v1945
        %1947 = vmatprep.mubr.bf16.mxu0 %v1131
        %1948 = vmatmul.mubr.bf16.gmra.mrb[0].mxu0 %v1130
        %v1949 = vpop.f32.mrb[0].mxu0
        %v1950 = vadd.f32 %v1277, %v1949
        %v1951 = vpop.f32.mrb[0].mxu0
        %v1952 = vadd.f32 %v1281, %v1951
        %v1953 = vpop.f32.mrb[0].mxu0
        %v1954 = vadd.f32 %v1277, %v1953
        %v1955 = vpop.f32.mrb[0].mxu0
        %v1956 = vadd.f32 %v1281, %v1955
        %1957 = vmatprep.mubr.bf16.mxu0 %v1133
        %1958 = vmatmul.mubr.bf16.gmra.mrb[0].mxu0 %v1132
        %v1959 = vpop.f32.mrb[0].mxu0
        %v1960 = vadd.f32 %v1277, %v1959
        %v1961 = vpop.f32.mrb[0].mxu0
        %v1962 = vadd.f32 %v1281, %v1961
        %v1963 = vpop.f32.mrb[0].mxu0
        %v1964 = vadd.f32 %v1277, %v1963
        %v1965 = vpop.f32.mrb[0].mxu0
        %v1966 = vadd.f32 %v1281, %v1965
        %1967 = vmatprep.mubr.bf16.mxu0 %v1135
        %1968 = vmatmul.mubr.bf16.gmra.mrb[0].mxu0 %v1134
        %v1969 = vpop.f32.mrb[0].mxu0
        %v1970 = vadd.f32 %v1277, %v1969
        %v1971 = vpop.f32.mrb[0].mxu0
        %v1972 = vadd.f32 %v1281, %v1971
        %v1973 = vpop.f32.mrb[0].mxu0
        %v1974 = vadd.f32 %v1277, %v1973
        %v1975 = vpop.f32.mrb[0].mxu0
        %v1976 = vadd.f32 %v1281, %v1975
        %1977 = vmatprep.mubr.bf16.mxu0 %v1137
        %1978 = vmatmul.mubr.bf16.gmra.mrb[0].mxu0 %v1136
        %v1979 = vpop.f32.mrb[0].mxu0
        %v1980 = vadd.f32 %v1277, %v1979
        %v1981 = vpop.f32.mrb[0].mxu0
        %v1982 = vadd.f32 %v1281, %v1981
        %v1983 = vpop.f32.mrb[0].mxu0
        %v1984 = vadd.f32 %v1277, %v1983
        %v1985 = vpop.f32.mrb[0].mxu0
        %v1986 = vadd.f32 %v1281, %v1985
        %1987 = vmatprep.mubr.bf16.mxu0 %v1139
        %1988 = vmatmul.mubr.bf16.gmra.mrb[0].mxu0 %v1138
        %v1989 = vpop.f32.mrb[0].mxu0
        %v1990 = vadd.f32 %v1277, %v1989
        %v1991 = vpop.f32.mrb[0].mxu0
        %v1992 = vadd.f32 %v1281, %v1991
        %v1993 = vpop.f32.mrb[0].mxu0
        %v1994 = vadd.f32 %v1277, %v1993
        %v1995 = vpop.f32.mrb[0].mxu0
        %v1996 = vadd.f32 %v1281, %v1995
        %1997 = vmatprep.mubr.bf16.mxu0 %v1141
        %1998 = vmatmul.mubr.bf16.gmra.mrb[0].mxu0 %v1140
        %v1999 = vpop.f32.mrb[0].mxu0
        %v2000 = vadd.f32 %v1277, %v1999
        %v2001 = vpop.f32.mrb[0].mxu0
        %v2002 = vadd.f32 %v1281, %v2001
        %v2003 = vpop.f32.mrb[0].mxu0
        %v2004 = vadd.f32 %v1277, %v2003
        %v2005 = vpop.f32.mrb[0].mxu0
        %v2006 = vadd.f32 %v1281, %v2005
        %2007 = vmatprep.mubr.bf16.mxu0 %v1143
        %2008 = vmatmul.mubr.bf16.gmra.mrb[0].mxu0 %v1142
        %v2009 = vpop.f32.mrb[0].mxu0
        %v2010 = vadd.f32 %v1277, %v2009
        %v2011 = vpop.f32.mrb[0].mxu0
        %v2012 = vadd.f32 %v1281, %v2011
        %v2013 = vpop.f32.mrb[0].mxu0
        %v2014 = vadd.f32 %v1277, %v2013
        %v2015 = vpop.f32.mrb[0].mxu0
        %v2016 = vadd.f32 %v1281, %v2015
        %2017 = vdwg.mxu0
        %2018 = vmatprep.subr.bf16.mxu0 %v1664
        %2019 = vmatpush1.bf16.msra.mxu0 %v1663
        %2020 = vmatprep.subr.bf16.mxu0 %v1671
        %2021 = vmatpush1.bf16.msra.mxu0 %v1670
        %2022 = vmatprep.subr.bf16.mxu0 %v1678
        %2023 = vmatpush1.bf16.msra.mxu0 %v1677
        %2024 = vmatprep.subr.bf16.mxu0 %v1685
        %2025 = vmatpush1.bf16.msra.mxu0 %v1684
        %2026 = vmatprep.subr.bf16.mxu0 %v1692
        %2027 = vmatpush1.bf16.msra.mxu0 %v1691
        %2028 = vmatprep.subr.bf16.mxu0 %v1699
        %2029 = vmatpush1.bf16.msra.mxu0 %v1698
        %2030 = vmatprep.subr.bf16.mxu0 %v1706
        %2031 = vmatpush1.bf16.msra.mxu0 %v1705
        %2032 = vmatprep.subr.bf16.mxu0 %v1713
        %2033 = vmatpush1.bf16.msra.mxu0 %v1712
        %2034 = vmatprep.subr.bf16.mxu0 %v1720
        %2035 = vmatpush1.bf16.msra.mxu0 %v1719
        %2036 = vmatprep.subr.bf16.mxu0 %v1727
        %2037 = vmatpush1.bf16.msra.mxu0 %v1726
        %2038 = vmatprep.subr.bf16.mxu0 %v1734
        %2039 = vmatpush1.bf16.msra.mxu0 %v1733
        %2040 = vmatprep.subr.bf16.mxu0 %v1741
        %2041 = vmatpush1.bf16.msra.mxu0 %v1740
        %2042 = vmatprep.subr.bf16.mxu0 %v1748
        %2043 = vmatpush1.bf16.msra.mxu0 %v1747
        %2044 = vmatprep.subr.bf16.mxu0 %v1755
        %2045 = vmatpush1.bf16.msra.mxu0 %v1754
        %2046 = vmatprep.subr.bf16.mxu0 %v1762
        %2047 = vmatpush1.bf16.msra.mxu0 %v1761
        %2048 = vmatprep.subr.bf16.mxu0 %v1769
        %2049 = vmatpush1.bf16.msra.mxu0 %v1768
        %2050 = vmatprep.mubr.bf16.mxu0 %v1125
        %2051 = vmatmul.mubr.bf16.gmra.mrb[0].mxu0 %v1124
        %v2052 = vpop.f32.mrb[0].mxu0
        %v2053 = vadd.f32 %v1285, %v2052
        %v2054 = vpop.f32.mrb[0].mxu0
        %v2055 = vadd.f32 %v1289, %v2054
        %v2056 = vpop.f32.mrb[0].mxu0
        %v2057 = vadd.f32 %v1285, %v2056
        %v2058 = vpop.f32.mrb[0].mxu0
        %v2059 = vadd.f32 %v1289, %v2058
        %2060 = vmatprep.mubr.bf16.mxu0 %v1127
        %2061 = vmatmul.mubr.bf16.gmra.mrb[0].mxu0 %v1126
        %v2062 = vpop.f32.mrb[0].mxu0
        %v2063 = vadd.f32 %v1285, %v2062
        %v2064 = vpop.f32.mrb[0].mxu0
        %v2065 = vadd.f32 %v1289, %v2064
        %v2066 = vpop.f32.mrb[0].mxu0
        %v2067 = vadd.f32 %v1285, %v2066
        %v2068 = vpop.f32.mrb[0].mxu0
        %v2069 = vadd.f32 %v1289, %v2068
        %2070 = vmatprep.mubr.bf16.mxu0 %v1129
        %2071 = vmatmul.mubr.bf16.gmra.mrb[0].mxu0 %v1128
        %v2072 = vpop.f32.mrb[0].mxu0
        %v2073 = vadd.f32 %v1285, %v2072
        %v2074 = vpop.f32.mrb[0].mxu0
        %v2075 = vadd.f32 %v1289, %v2074
        %v2076 = vpop.f32.mrb[0].mxu0
        %v2077 = vadd.f32 %v1285, %v2076
        %v2078 = vpop.f32.mrb[0].mxu0
        %v2079 = vadd.f32 %v1289, %v2078
        %2080 = vmatprep.mubr.bf16.mxu0 %v1131
        %2081 = vmatmul.mubr.bf16.gmra.mrb[0].mxu0 %v1130
        %v2082 = vpop.f32.mrb[0].mxu0
        %v2083 = vadd.f32 %v1285, %v2082
        %v2084 = vpop.f32.mrb[0].mxu0
        %v2085 = vadd.f32 %v1289, %v2084
        %v2086 = vpop.f32.mrb[0].mxu0
        %v2087 = vadd.f32 %v1285, %v2086
        %v2088 = vpop.f32.mrb[0].mxu0
        %v2089 = vadd.f32 %v1289, %v2088
        %2090 = vmatprep.mubr.bf16.mxu0 %v1133
        %2091 = vmatmul.mubr.bf16.gmra.mrb[0].mxu0 %v1132
        %v2092 = vpop.f32.mrb[0].mxu0
        %v2093 = vadd.f32 %v1285, %v2092
        %v2094 = vpop.f32.mrb[0].mxu0
        %v2095 = vadd.f32 %v1289, %v2094
        %v2096 = vpop.f32.mrb[0].mxu0
        %v2097 = vadd.f32 %v1285, %v2096
        %v2098 = vpop.f32.mrb[0].mxu0
        %v2099 = vadd.f32 %v1289, %v2098
        %2100 = vmatprep.mubr.bf16.mxu0 %v1135
        %2101 = vmatmul.mubr.bf16.gmra.mrb[0].mxu0 %v1134
        %v2102 = vpop.f32.mrb[0].mxu0
        %v2103 = vadd.f32 %v1285, %v2102
        %v2104 = vpop.f32.mrb[0].mxu0
        %v2105 = vadd.f32 %v1289, %v2104
        %v2106 = vpop.f32.mrb[0].mxu0
        %v2107 = vadd.f32 %v1285, %v2106
        %v2108 = vpop.f32.mrb[0].mxu0
        %v2109 = vadd.f32 %v1289, %v2108
        %2110 = vmatprep.mubr.bf16.mxu0 %v1137
        %2111 = vmatmul.mubr.bf16.gmra.mrb[0].mxu0 %v1136
        %v2112 = vpop.f32.mrb[0].mxu0
        %v2113 = vadd.f32 %v1285, %v2112
        %v2114 = vpop.f32.mrb[0].mxu0
        %v2115 = vadd.f32 %v1289, %v2114
        %v2116 = vpop.f32.mrb[0].mxu0
        %v2117 = vadd.f32 %v1285, %v2116
        %v2118 = vpop.f32.mrb[0].mxu0
        %v2119 = vadd.f32 %v1289, %v2118
        %2120 = vmatprep.mubr.bf16.mxu0 %v1139
        %2121 = vmatmul.mubr.bf16.gmra.mrb[0].mxu0 %v1138
        %v2122 = vpop.f32.mrb[0].mxu0
        %v2123 = vadd.f32 %v1285, %v2122
        %v2124 = vpop.f32.mrb[0].mxu0
        %v2125 = vadd.f32 %v1289, %v2124
        %v2126 = vpop.f32.mrb[0].mxu0
        %v2127 = vadd.f32 %v1285, %v2126
        %v2128 = vpop.f32.mrb[0].mxu0
        %v2129 = vadd.f32 %v1289, %v2128
        %2130 = vmatprep.mubr.bf16.mxu0 %v1141
        %2131 = vmatmul.mubr.bf16.gmra.mrb[0].mxu0 %v1140
        %v2132 = vpop.f32.mrb[0].mxu0
        %v2133 = vadd.f32 %v1285, %v2132
        %v2134 = vpop.f32.mrb[0].mxu0
        %v2135 = vadd.f32 %v1289, %v2134
        %v2136 = vpop.f32.mrb[0].mxu0
        %v2137 = vadd.f32 %v1285, %v2136
        %v2138 = vpop.f32.mrb[0].mxu0
        %v2139 = vadd.f32 %v1289, %v2138
        %2140 = vmatprep.mubr.bf16.mxu0 %v1143
        %2141 = vmatmul.mubr.bf16.gmra.mrb[0].mxu0 %v1142
        %v2142 = vpop.f32.mrb[0].mxu0
        %v2143 = vadd.f32 %v1285, %v2142
        %v2144 = vpop.f32.mrb[0].mxu0
        %v2145 = vadd.f32 %v1289, %v2144
        %v2146 = vpop.f32.mrb[0].mxu0
        %v2147 = vadd.f32 %v1285, %v2146
        %v2148 = vpop.f32.mrb[0].mxu0
        %v2149 = vadd.f32 %v1289, %v2148
        %2150 = vdwg.mxu0
        %2151 = vmatprep.subr.bf16.mxu0 %v1666
        %2152 = vmatpush1.bf16.msra.mxu0 %v1665
        %2153 = vmatprep.subr.bf16.mxu0 %v1673
        %2154 = vmatpush1.bf16.msra.mxu0 %v1672
        %2155 = vmatprep.subr.bf16.mxu0 %v1680
        %2156 = vmatpush1.bf16.msra.mxu0 %v1679
        %2157 = vmatprep.subr.bf16.mxu0 %v1687
        %2158 = vmatpush1.bf16.msra.mxu0 %v1686
        %2159 = vmatprep.subr.bf16.mxu0 %v1694
        %2160 = vmatpush1.bf16.msra.mxu0 %v1693
        %2161 = vmatprep.subr.bf16.mxu0 %v1701
        %2162 = vmatpush1.bf16.msra.mxu0 %v1700
        %2163 = vmatprep.subr.bf16.mxu0 %v1708
        %2164 = vmatpush1.bf16.msra.mxu0 %v1707
        %2165 = vmatprep.subr.bf16.mxu0 %v1715
        %2166 = vmatpush1.bf16.msra.mxu0 %v1714
        %2167 = vmatprep.subr.bf16.mxu0 %v1722
        %2168 = vmatpush1.bf16.msra.mxu0 %v1721
        %2169 = vmatprep.subr.bf16.mxu0 %v1729
        %2170 = vmatpush1.bf16.msra.mxu0 %v1728
        %2171 = vmatprep.subr.bf16.mxu0 %v1736
        %2172 = vmatpush1.bf16.msra.mxu0 %v1735
        %2173 = vmatprep.subr.bf16.mxu0 %v1743
        %2174 = vmatpush1.bf16.msra.mxu0 %v1742
        %2175 = vmatprep.subr.bf16.mxu0 %v1750
        %2176 = vmatpush1.bf16.msra.mxu0 %v1749
        %2177 = vmatprep.subr.bf16.mxu0 %v1757
        %2178 = vmatpush1.bf16.msra.mxu0 %v1756
        %2179 = vmatprep.subr.bf16.mxu0 %v1764
        %2180 = vmatpush1.bf16.msra.mxu0 %v1763
        %2181 = vmatprep.subr.bf16.mxu0 %v1771
        %2182 = vmatpush1.bf16.msra.mxu0 %v1770
        %2183 = vmatprep.mubr.bf16.mxu0 %v1125
        %2184 = vmatmul.mubr.bf16.gmra.mrb[0].mxu0 %v1124
        %v2185 = vpop.f32.mrb[0].mxu0
        %v2186 = vadd.f32 %v1293, %v2185
        %v2187 = vpop.f32.mrb[0].mxu0
        %v2188 = vadd.f32 %v1297, %v2187
        %v2189 = vpop.f32.mrb[0].mxu0
        %v2190 = vadd.f32 %v1293, %v2189
        %v2191 = vpop.f32.mrb[0].mxu0
        %v2192 = vadd.f32 %v1297, %v2191
        %2193 = vmatprep.mubr.bf16.mxu0 %v1127
        %2194 = vmatmul.mubr.bf16.gmra.mrb[0].mxu0 %v1126
        %v2195 = vpop.f32.mrb[0].mxu0
        %v2196 = vadd.f32 %v1293, %v2195
        %v2197 = vpop.f32.mrb[0].mxu0
        %v2198 = vadd.f32 %v1297, %v2197
        %v2199 = vpop.f32.mrb[0].mxu0
        %v2200 = vadd.f32 %v1293, %v2199
        %v2201 = vpop.f32.mrb[0].mxu0
        %v2202 = vadd.f32 %v1297, %v2201
        %2203 = vmatprep.mubr.bf16.mxu0 %v1129
        %2204 = vmatmul.mubr.bf16.gmra.mrb[0].mxu0 %v1128
        %v2205 = vpop.f32.mrb[0].mxu0
        %v2206 = vadd.f32 %v1293, %v2205
        %v2207 = vpop.f32.mrb[0].mxu0
        %v2208 = vadd.f32 %v1297, %v2207
        %v2209 = vpop.f32.mrb[0].mxu0
        %v2210 = vadd.f32 %v1293, %v2209
        %v2211 = vpop.f32.mrb[0].mxu0
        %v2212 = vadd.f32 %v1297, %v2211
        %2213 = vmatprep.mubr.bf16.mxu0 %v1131
        %2214 = vmatmul.mubr.bf16.gmra.mrb[0].mxu0 %v1130
        %v2215 = vpop.f32.mrb[0].mxu0
        %v2216 = vadd.f32 %v1293, %v2215
        %v2217 = vpop.f32.mrb[0].mxu0
        %v2218 = vadd.f32 %v1297, %v2217
        %v2219 = vpop.f32.mrb[0].mxu0
        %v2220 = vadd.f32 %v1293, %v2219
        %v2221 = vpop.f32.mrb[0].mxu0
        %v2222 = vadd.f32 %v1297, %v2221
        %2223 = vmatprep.mubr.bf16.mxu0 %v1133
        %2224 = vmatmul.mubr.bf16.gmra.mrb[0].mxu0 %v1132
        %v2225 = vpop.f32.mrb[0].mxu0
        %v2226 = vadd.f32 %v1293, %v2225
        %v2227 = vpop.f32.mrb[0].mxu0
        %v2228 = vadd.f32 %v1297, %v2227
        %v2229 = vpop.f32.mrb[0].mxu0
        %v2230 = vadd.f32 %v1293, %v2229
        %v2231 = vpop.f32.mrb[0].mxu0
        %v2232 = vadd.f32 %v1297, %v2231
        %2233 = vmatprep.mubr.bf16.mxu0 %v1135
        %2234 = vmatmul.mubr.bf16.gmra.mrb[0].mxu0 %v1134
        %v2235 = vpop.f32.mrb[0].mxu0
        %v2236 = vadd.f32 %v1293, %v2235
        %v2237 = vpop.f32.mrb[0].mxu0
        %v2238 = vadd.f32 %v1297, %v2237
        %v2239 = vpop.f32.mrb[0].mxu0
        %v2240 = vadd.f32 %v1293, %v2239
        %v2241 = vpop.f32.mrb[0].mxu0
        %v2242 = vadd.f32 %v1297, %v2241
        %2243 = vmatprep.mubr.bf16.mxu0 %v1137
        %2244 = vmatmul.mubr.bf16.gmra.mrb[0].mxu0 %v1136
        %v2245 = vpop.f32.mrb[0].mxu0
        %v2246 = vadd.f32 %v1293, %v2245
        %v2247 = vpop.f32.mrb[0].mxu0
        %v2248 = vadd.f32 %v1297, %v2247
        %v2249 = vpop.f32.mrb[0].mxu0
        %v2250 = vadd.f32 %v1293, %v2249
        %v2251 = vpop.f32.mrb[0].mxu0
        %v2252 = vadd.f32 %v1297, %v2251
        %2253 = vmatprep.mubr.bf16.mxu0 %v1139
        %2254 = vmatmul.mubr.bf16.gmra.mrb[0].mxu0 %v1138
        %v2255 = vpop.f32.mrb[0].mxu0
        %v2256 = vadd.f32 %v1293, %v2255
        %v2257 = vpop.f32.mrb[0].mxu0
        %v2258 = vadd.f32 %v1297, %v2257
        %v2259 = vpop.f32.mrb[0].mxu0
        %v2260 = vadd.f32 %v1293, %v2259
        %v2261 = vpop.f32.mrb[0].mxu0
        %v2262 = vadd.f32 %v1297, %v2261
        %2263 = vmatprep.mubr.bf16.mxu0 %v1141
        %2264 = vmatmul.mubr.bf16.gmra.mrb[0].mxu0 %v1140
        %v2265 = vpop.f32.mrb[0].mxu0
        %v2266 = vadd.f32 %v1293, %v2265
        %v2267 = vpop.f32.mrb[0].mxu0
        %v2268 = vadd.f32 %v1297, %v2267
        %v2269 = vpop.f32.mrb[0].mxu0
        %v2270 = vadd.f32 %v1293, %v2269
        %v2271 = vpop.f32.mrb[0].mxu0
        %v2272 = vadd.f32 %v1297, %v2271
        %2273 = vmatprep.mubr.bf16.mxu0 %v1143
        %2274 = vmatmul.mubr.bf16.gmra.mrb[0].mxu0 %v1142
        %v2275 = vpop.f32.mrb[0].mxu0
        %v2276 = vadd.f32 %v1293, %v2275
        %v2277 = vpop.f32.mrb[0].mxu0
        %v2278 = vadd.f32 %v1297, %v2277
        %v2279 = vpop.f32.mrb[0].mxu0
        %v2280 = vadd.f32 %v1293, %v2279
        %v2281 = vpop.f32.mrb[0].mxu0
        %v2282 = vadd.f32 %v1297, %v2281
        %2283 = vdwg.mxu0
        %2284 = vmatprep.subr.bf16.mxu0 0
        %2285 = vmatpush1.bf16.msra.mxu0 %v1667
        %2286 = vmatprep.subr.bf16.mxu0 0
        %2287 = vmatpush1.bf16.msra.mxu0 %v1674
        %2288 = vmatprep.subr.bf16.mxu0 0
        %2289 = vmatpush1.bf16.msra.mxu0 %v1681
        %2290 = vmatprep.subr.bf16.mxu0 0
        %2291 = vmatpush1.bf16.msra.mxu0 %v1688
        %2292 = vmatprep.subr.bf16.mxu0 0
        %2293 = vmatpush1.bf16.msra.mxu0 %v1695
        %2294 = vmatprep.subr.bf16.mxu0 0
        %2295 = vmatpush1.bf16.msra.mxu0 %v1702
        %2296 = vmatprep.subr.bf16.mxu0 0
        %2297 = vmatpush1.bf16.msra.mxu0 %v1709
        %2298 = vmatprep.subr.bf16.mxu0 0
        %2299 = vmatpush1.bf16.msra.mxu0 %v1716
        %2300 = vmatprep.subr.bf16.mxu0 0
        %2301 = vmatpush1.bf16.msra.mxu0 %v1723
        %2302 = vmatprep.subr.bf16.mxu0 0
        %2303 = vmatpush1.bf16.msra.mxu0 %v1730
        %2304 = vmatprep.subr.bf16.mxu0 0
        %2305 = vmatpush1.bf16.msra.mxu0 %v1737
        %2306 = vmatprep.subr.bf16.mxu0 0
        %2307 = vmatpush1.bf16.msra.mxu0 %v1744
        %2308 = vmatprep.subr.bf16.mxu0 0
        %2309 = vmatpush1.bf16.msra.mxu0 %v1751
        %2310 = vmatprep.subr.bf16.mxu0 0
        %2311 = vmatpush1.bf16.msra.mxu0 %v1758
        %2312 = vmatprep.subr.bf16.mxu0 0
        %2313 = vmatpush1.bf16.msra.mxu0 %v1765
        %2314 = vmatprep.subr.bf16.mxu0 0
        %2315 = vmatpush1.bf16.msra.mxu0 %v1772
        %2316 = vmatprep.mubr.bf16.mxu0 %v1125
        %2317 = vmatmul.mubr.bf16.gmra.mrb[0].mxu0 %v1124
        %v2318 = vpop.f32.mrb[0].mxu0
        %v2319 = vadd.f32 %v1301, %v2318
        %v2320 = vpop.f32.mrb[0].mxu0
        %v2321 = vpop.f32.mrb[0].mxu0
        %v2322 = vadd.f32 %v1301, %v2321
        %v2323 = vpop.f32.mrb[0].mxu0
        %2324 = vmatprep.mubr.bf16.mxu0 %v1127
        %2325 = vmatmul.mubr.bf16.gmra.mrb[0].mxu0 %v1126
        %v2326 = vpop.f32.mrb[0].mxu0
        %v2327 = vadd.f32 %v1301, %v2326
        %v2328 = vpop.f32.mrb[0].mxu0
        %v2329 = vpop.f32.mrb[0].mxu0
        %v2330 = vadd.f32 %v1301, %v2329
        %v2331 = vpop.f32.mrb[0].mxu0
        %2332 = vmatprep.mubr.bf16.mxu0 %v1129
        %2333 = vmatmul.mubr.bf16.gmra.mrb[0].mxu0 %v1128
        %v2334 = vpop.f32.mrb[0].mxu0
        %v2335 = vadd.f32 %v1301, %v2334
        %v2336 = vpop.f32.mrb[0].mxu0
        %v2337 = vpop.f32.mrb[0].mxu0
        %v2338 = vadd.f32 %v1301, %v2337
        %v2339 = vpop.f32.mrb[0].mxu0
        %2340 = vmatprep.mubr.bf16.mxu0 %v1131
        %2341 = vmatmul.mubr.bf16.gmra.mrb[0].mxu0 %v1130
        %v2342 = vpop.f32.mrb[0].mxu0
        %v2343 = vadd.f32 %v1301, %v2342
        %v2344 = vpop.f32.mrb[0].mxu0
        %v2345 = vpop.f32.mrb[0].mxu0
        %v2346 = vadd.f32 %v1301, %v2345
        %v2347 = vpop.f32.mrb[0].mxu0
        %2348 = vmatprep.mubr.bf16.mxu0 %v1133
        %2349 = vmatmul.mubr.bf16.gmra.mrb[0].mxu0 %v1132
        %v2350 = vpop.f32.mrb[0].mxu0
        %v2351 = vadd.f32 %v1301, %v2350
        %v2352 = vpop.f32.mrb[0].mxu0
        %v2353 = vpop.f32.mrb[0].mxu0
        %v2354 = vadd.f32 %v1301, %v2353
        %v2355 = vpop.f32.mrb[0].mxu0
        %2356 = vmatprep.mubr.bf16.mxu0 %v1135
        %2357 = vmatmul.mubr.bf16.gmra.mrb[0].mxu0 %v1134
        %v2358 = vpop.f32.mrb[0].mxu0
        %v2359 = vadd.f32 %v1301, %v2358
        %v2360 = vpop.f32.mrb[0].mxu0
        %v2361 = vpop.f32.mrb[0].mxu0
        %v2362 = vadd.f32 %v1301, %v2361
        %v2363 = vpop.f32.mrb[0].mxu0
        %2364 = vmatprep.mubr.bf16.mxu0 %v1137
        %2365 = vmatmul.mubr.bf16.gmra.mrb[0].mxu0 %v1136
        %v2366 = vpop.f32.mrb[0].mxu0
        %v2367 = vadd.f32 %v1301, %v2366
        %v2368 = vpop.f32.mrb[0].mxu0
        %v2369 = vpop.f32.mrb[0].mxu0
        %v2370 = vadd.f32 %v1301, %v2369
        %v2371 = vpop.f32.mrb[0].mxu0
        %2372 = vmatprep.mubr.bf16.mxu0 %v1139
        %2373 = vmatmul.mubr.bf16.gmra.mrb[0].mxu0 %v1138
        %v2374 = vpop.f32.mrb[0].mxu0
        %v2375 = vadd.f32 %v1301, %v2374
        %v2376 = vpop.f32.mrb[0].mxu0
        %v2377 = vpop.f32.mrb[0].mxu0
        %v2378 = vadd.f32 %v1301, %v2377
        %v2379 = vpop.f32.mrb[0].mxu0
        %2380 = vmatprep.mubr.bf16.mxu0 %v1141
        %2381 = vmatmul.mubr.bf16.gmra.mrb[0].mxu0 %v1140
        %v2382 = vpop.f32.mrb[0].mxu0
        %v2383 = vadd.f32 %v1301, %v2382
        %v2384 = vpop.f32.mrb[0].mxu0
        %v2385 = vpop.f32.mrb[0].mxu0
        %v2386 = vadd.f32 %v1301, %v2385
        %v2387 = vpop.f32.mrb[0].mxu0
        %2388 = vmatprep.mubr.bf16.mxu0 %v1143
        %2389 = vmatmul.mubr.bf16.gmra.mrb[0].mxu0 %v1142
        %v2390 = vpop.f32.mrb[0].mxu0
        %v2391 = vadd.f32 %v1301, %v2390
        %v2392 = vpop.f32.mrb[0].mxu0
        %v2393 = vpop.f32.mrb[0].mxu0
        %v2394 = vadd.f32 %v1301, %v2393
        %v2395 = vpop.f32.mrb[0].mxu0
        %2396 = vdwg.mxu0
        %v2397 = vtanh.pop %v1920
        %v2398 = vtanh.pop %v1922
        %v2399 = vtanh.pop %v2053
        %v2400 = vtanh.pop %v2055
        %v2401 = vtanh.pop %v2186
        %v2402 = vtanh.pop %v2188
        %v2403 = vtanh.pop %v2319
        %v2404 = vtanh.pop %v1924
        %v2405 = vtanh.pop %v1926
        %v2406 = vtanh.pop %v2057
        %v2407 = vtanh.pop %v2059
        %v2408 = vtanh.pop %v2190
        %v2409 = vtanh.pop %v2192
        %v2410 = vtanh.pop %v2322
        %v2411 = vtanh.pop %v1930
        %v2412 = vtanh.pop %v1932
        %v2413 = vtanh.pop %v2063
        %v2414 = vtanh.pop %v2065
        %v2415 = vtanh.pop %v2196
        %v2416 = vtanh.pop %v2198
        %v2417 = vtanh.pop %v2327
        %v2418 = vtanh.pop %v1934
        %v2419 = vtanh.pop %v1936
        %v2420 = vtanh.pop %v2067
        %v2421 = vtanh.pop %v2069
        %v2422 = vtanh.pop %v2200
        %v2423 = vtanh.pop %v2202
        %v2424 = vtanh.pop %v2330
        %v2425 = vtanh.pop %v1940
        %v2426 = vtanh.pop %v1942
        %v2427 = vtanh.pop %v2073
        %v2428 = vtanh.pop %v2075
        %v2429 = vtanh.pop %v2206
        %v2430 = vtanh.pop %v2208
        %v2431 = vtanh.pop %v2335
        %v2432 = vtanh.pop %v1944
        %v2433 = vtanh.pop %v1946
        %v2434 = vtanh.pop %v2077
        %v2435 = vtanh.pop %v2079
        %v2436 = vtanh.pop %v2210
        %v2437 = vtanh.pop %v2212
        %v2438 = vtanh.pop %v2338
        %v2439 = vtanh.pop %v1950
        %v2440 = vtanh.pop %v1952
        %v2441 = vtanh.pop %v2083
        %v2442 = vtanh.pop %v2085
        %v2443 = vtanh.pop %v2216
        %v2444 = vtanh.pop %v2218
        %v2445 = vtanh.pop %v2343
        %v2446 = vtanh.pop %v1954
        %v2447 = vtanh.pop %v1956
        %v2448 = vtanh.pop %v2087
        %v2449 = vtanh.pop %v2089
        %v2450 = vtanh.pop %v2220
        %v2451 = vtanh.pop %v2222
        %v2452 = vtanh.pop %v2346
        %v2453 = vtanh.pop %v1960
        %v2454 = vtanh.pop %v1962
        %v2455 = vtanh.pop %v2093
        %v2456 = vtanh.pop %v2095
        %v2457 = vtanh.pop %v2226
        %v2458 = vtanh.pop %v2228
        %v2459 = vtanh.pop %v2351
        %v2460 = vtanh.pop %v1964
        %v2461 = vtanh.pop %v1966
        %v2462 = vtanh.pop %v2097
        %v2463 = vtanh.pop %v2099
        %v2464 = vtanh.pop %v2230
        %v2465 = vtanh.pop %v2232
        %v2466 = vtanh.pop %v2354
        %v2467 = vtanh.pop %v1970
        %v2468 = vtanh.pop %v1972
        %v2469 = vtanh.pop %v2103
        %v2470 = vtanh.pop %v2105
        %v2471 = vtanh.pop %v2236
        %v2472 = vtanh.pop %v2238
        %v2473 = vtanh.pop %v2359
        %v2474 = vtanh.pop %v1974
        %v2475 = vtanh.pop %v1976
        %v2476 = vtanh.pop %v2107
        %v2477 = vtanh.pop %v2109
        %v2478 = vtanh.pop %v2240
        %v2479 = vtanh.pop %v2242
        %v2480 = vtanh.pop %v2362
        %v2481 = vtanh.pop %v1980
        %v2482 = vtanh.pop %v1982
        %v2483 = vtanh.pop %v2113
        %v2484 = vtanh.pop %v2115
        %v2485 = vtanh.pop %v2246
        %v2486 = vtanh.pop %v2248
        %v2487 = vtanh.pop %v2367
        %v2488 = vtanh.pop %v1984
        %v2489 = vtanh.pop %v1986
        %v2490 = vtanh.pop %v2117
        %v2491 = vtanh.pop %v2119
        %v2492 = vtanh.pop %v2250
        %v2493 = vtanh.pop %v2252
        %v2494 = vtanh.pop %v2370
        %v2495 = vtanh.pop %v1990
        %v2496 = vtanh.pop %v1992
        %v2497 = vtanh.pop %v2123
        %v2498 = vtanh.pop %v2125
        %v2499 = vtanh.pop %v2256
        %v2500 = vtanh.pop %v2258
        %v2501 = vtanh.pop %v2375
        %v2502 = vtanh.pop %v1994
        %v2503 = vtanh.pop %v1996
        %v2504 = vtanh.pop %v2127
        %v2505 = vtanh.pop %v2129
        %v2506 = vtanh.pop %v2260
        %v2507 = vtanh.pop %v2262
        %v2508 = vtanh.pop %v2378
        %v2509 = vtanh.pop %v2000
        %v2510 = vtanh.pop %v2002
        %v2511 = vtanh.pop %v2133
        %v2512 = vtanh.pop %v2135
        %v2513 = vtanh.pop %v2266
        %v2514 = vtanh.pop %v2268
        %v2515 = vtanh.pop %v2383
        %v2516 = vtanh.pop %v2004
        %v2517 = vtanh.pop %v2006
        %v2518 = vtanh.pop %v2137
        %v2519 = vtanh.pop %v2139
        %v2520 = vtanh.pop %v2270
        %v2521 = vtanh.pop %v2272
        %v2522 = vtanh.pop %v2386
        %v2523 = vtanh.pop %v2010
        %v2524 = vtanh.pop %v2012
        %v2525 = vtanh.pop %v2143
        %v2526 = vtanh.pop %v2145
        %v2527 = vtanh.pop %v2276
        %v2528 = vtanh.pop %v2278
        %v2529 = vtanh.pop %v2391
        %v2530 = vtanh.pop %v2014
        %v2531 = vtanh.pop %v2016
        %v2532 = vtanh.pop %v2147
        %v2533 = vtanh.pop %v2149
        %v2534 = vtanh.pop %v2280
        %v2535 = vtanh.pop %v2282
        %v2536 = vtanh.pop %v2394
        %v2537 = vpack.c.bf16 %v2404, %v2397
        %v2538 = vpack.c.bf16 %v2405, %v2398
        %v2539 = vpack.c.bf16 %v2406, %v2399
        %v2540 = vpack.c.bf16 %v2407, %v2400
        %v2541 = vpack.c.bf16 %v2408, %v2401
        %v2542 = vpack.c.bf16 %v2409, %v2402
        %v2543 = vpack.c.bf16 %v2410, %v2403
        %v2544 = vpack.c.bf16 %v2418, %v2411
        %v2545 = vpack.c.bf16 %v2419, %v2412
        %v2546 = vpack.c.bf16 %v2420, %v2413
        %v2547 = vpack.c.bf16 %v2421, %v2414
        %v2548 = vpack.c.bf16 %v2422, %v2415
        %v2549 = vpack.c.bf16 %v2423, %v2416
        %v2550 = vpack.c.bf16 %v2424, %v2417
        %v2551 = vpack.c.bf16 %v2432, %v2425
        %v2552 = vpack.c.bf16 %v2433, %v2426
        %v2553 = vpack.c.bf16 %v2434, %v2427
        %v2554 = vpack.c.bf16 %v2435, %v2428
        %v2555 = vpack.c.bf16 %v2436, %v2429
        %v2556 = vpack.c.bf16 %v2437, %v2430
        %v2557 = vpack.c.bf16 %v2438, %v2431
        %v2558 = vpack.c.bf16 %v2446, %v2439
        %v2559 = vpack.c.bf16 %v2447, %v2440
        %v2560 = vpack.c.bf16 %v2448, %v2441
        %v2561 = vpack.c.bf16 %v2449, %v2442
        %v2562 = vpack.c.bf16 %v2450, %v2443
        %v2563 = vpack.c.bf16 %v2451, %v2444
        %v2564 = vpack.c.bf16 %v2452, %v2445
        %v2565 = vpack.c.bf16 %v2460, %v2453
        %v2566 = vpack.c.bf16 %v2461, %v2454
        %v2567 = vpack.c.bf16 %v2462, %v2455
        %v2568 = vpack.c.bf16 %v2463, %v2456
        %v2569 = vpack.c.bf16 %v2464, %v2457
        %v2570 = vpack.c.bf16 %v2465, %v2458
        %v2571 = vpack.c.bf16 %v2466, %v2459
        %v2572 = vpack.c.bf16 %v2474, %v2467
        %v2573 = vpack.c.bf16 %v2475, %v2468
        %v2574 = vpack.c.bf16 %v2476, %v2469
        %v2575 = vpack.c.bf16 %v2477, %v2470
        %v2576 = vpack.c.bf16 %v2478, %v2471
        %v2577 = vpack.c.bf16 %v2479, %v2472
        %v2578 = vpack.c.bf16 %v2480, %v2473
        %v2579 = vpack.c.bf16 %v2488, %v2481
        %v2580 = vpack.c.bf16 %v2489, %v2482
        %v2581 = vpack.c.bf16 %v2490, %v2483
        %v2582 = vpack.c.bf16 %v2491, %v2484
        %v2583 = vpack.c.bf16 %v2492, %v2485
        %v2584 = vpack.c.bf16 %v2493, %v2486
        %v2585 = vpack.c.bf16 %v2494, %v2487
        %v2586 = vpack.c.bf16 %v2502, %v2495
        %v2587 = vpack.c.bf16 %v2503, %v2496
        %v2588 = vpack.c.bf16 %v2504, %v2497
        %v2589 = vpack.c.bf16 %v2505, %v2498
        %v2590 = vpack.c.bf16 %v2506, %v2499
        %v2591 = vpack.c.bf16 %v2507, %v2500
        %v2592 = vpack.c.bf16 %v2508, %v2501
        %v2593 = vpack.c.bf16 %v2516, %v2509
        %v2594 = vpack.c.bf16 %v2517, %v2510
        %v2595 = vpack.c.bf16 %v2518, %v2511
        %v2596 = vpack.c.bf16 %v2519, %v2512
        %v2597 = vpack.c.bf16 %v2520, %v2513
        %v2598 = vpack.c.bf16 %v2521, %v2514
        %v2599 = vpack.c.bf16 %v2522, %v2515
        %v2600 = vpack.c.bf16 %v2530, %v2523
        %v2601 = vpack.c.bf16 %v2531, %v2524
        %v2602 = vpack.c.bf16 %v2532, %v2525
        %v2603 = vpack.c.bf16 %v2533, %v2526
        %v2604 = vpack.c.bf16 %v2534, %v2527
        %v2605 = vpack.c.bf16 %v2535, %v2528
        %v2606 = vpack.c.bf16 %v2536, %v2529
        %v2677 = vunpack.c.l.b16 %v2537
        %v2678 = vunpack.c.l.b16 %v2538
        %v2679 = vunpack.c.l.b16 %v2539
        %v2680 = vunpack.c.l.b16 %v2540
        %v2681 = vunpack.c.l.b16 %v2541
        %v2682 = vunpack.c.l.b16 %v2542
        %v2683 = vunpack.c.l.b16 %v2543
        %v2684 = vunpack.c.h.b16 %v2537
        %v2685 = vunpack.c.h.b16 %v2538
        %v2686 = vunpack.c.h.b16 %v2539
        %v2687 = vunpack.c.h.b16 %v2540
        %v2688 = vunpack.c.h.b16 %v2541
        %v2689 = vunpack.c.h.b16 %v2542
        %v2690 = vunpack.c.h.b16 %v2543
        %v2691 = vunpack.c.l.b16 %v2544
        %v2692 = vunpack.c.l.b16 %v2545
        %v2693 = vunpack.c.l.b16 %v2546
        %v2694 = vunpack.c.l.b16 %v2547
        %v2695 = vunpack.c.l.b16 %v2548
        %v2696 = vunpack.c.l.b16 %v2549
        %v2697 = vunpack.c.l.b16 %v2550
        %v2698 = vunpack.c.h.b16 %v2544
        %v2699 = vunpack.c.h.b16 %v2545
        %v2700 = vunpack.c.h.b16 %v2546
        %v2701 = vunpack.c.h.b16 %v2547
        %v2702 = vunpack.c.h.b16 %v2548
        %v2703 = vunpack.c.h.b16 %v2549
        %v2704 = vunpack.c.h.b16 %v2550
        %v2705 = vunpack.c.l.b16 %v2551
        %v2706 = vunpack.c.l.b16 %v2552
        %v2707 = vunpack.c.l.b16 %v2553
        %v2708 = vunpack.c.l.b16 %v2554
        %v2709 = vunpack.c.l.b16 %v2555
        %v2710 = vunpack.c.l.b16 %v2556
        %v2711 = vunpack.c.l.b16 %v2557
        %v2712 = vunpack.c.h.b16 %v2551
        %v2713 = vunpack.c.h.b16 %v2552
        %v2714 = vunpack.c.h.b16 %v2553
        %v2715 = vunpack.c.h.b16 %v2554
        %v2716 = vunpack.c.h.b16 %v2555
        %v2717 = vunpack.c.h.b16 %v2556
        %v2718 = vunpack.c.h.b16 %v2557
        %v2719 = vunpack.c.l.b16 %v2558
        %v2720 = vunpack.c.l.b16 %v2559
        %v2721 = vunpack.c.l.b16 %v2560
        %v2722 = vunpack.c.l.b16 %v2561
        %v2723 = vunpack.c.l.b16 %v2562
        %v2724 = vunpack.c.l.b16 %v2563
        %v2725 = vunpack.c.l.b16 %v2564
        %v2726 = vunpack.c.h.b16 %v2558
        %v2727 = vunpack.c.h.b16 %v2559
        %v2728 = vunpack.c.h.b16 %v2560
        %v2729 = vunpack.c.h.b16 %v2561
        %v2730 = vunpack.c.h.b16 %v2562
        %v2731 = vunpack.c.h.b16 %v2563
        %v2732 = vunpack.c.h.b16 %v2564
        %v2733 = vunpack.c.l.b16 %v2565
        %v2734 = vunpack.c.l.b16 %v2566
        %v2735 = vunpack.c.l.b16 %v2567
        %v2736 = vunpack.c.l.b16 %v2568
        %v2737 = vunpack.c.l.b16 %v2569
        %v2738 = vunpack.c.l.b16 %v2570
        %v2739 = vunpack.c.l.b16 %v2571
        %v2740 = vunpack.c.h.b16 %v2565
        %v2741 = vunpack.c.h.b16 %v2566
        %v2742 = vunpack.c.h.b16 %v2567
        %v2743 = vunpack.c.h.b16 %v2568
        %v2744 = vunpack.c.h.b16 %v2569
        %v2745 = vunpack.c.h.b16 %v2570
        %v2746 = vunpack.c.h.b16 %v2571
        %v2747 = vunpack.c.l.b16 %v2572
        %v2748 = vunpack.c.l.b16 %v2573
        %v2749 = vunpack.c.l.b16 %v2574
        %v2750 = vunpack.c.l.b16 %v2575
        %v2751 = vunpack.c.l.b16 %v2576
        %v2752 = vunpack.c.l.b16 %v2577
        %v2753 = vunpack.c.l.b16 %v2578
        %v2754 = vunpack.c.h.b16 %v2572
        %v2755 = vunpack.c.h.b16 %v2573
        %v2756 = vunpack.c.h.b16 %v2574
        %v2757 = vunpack.c.h.b16 %v2575
        %v2758 = vunpack.c.h.b16 %v2576
        %v2759 = vunpack.c.h.b16 %v2577
        %v2760 = vunpack.c.h.b16 %v2578
        %v2761 = vunpack.c.l.b16 %v2579
        %v2762 = vunpack.c.l.b16 %v2580
        %v2763 = vunpack.c.l.b16 %v2581
        %v2764 = vunpack.c.l.b16 %v2582
        %v2765 = vunpack.c.l.b16 %v2583
        %v2766 = vunpack.c.l.b16 %v2584
        %v2767 = vunpack.c.l.b16 %v2585
        %v2768 = vunpack.c.h.b16 %v2579
        %v2769 = vunpack.c.h.b16 %v2580
        %v2770 = vunpack.c.h.b16 %v2581
        %v2771 = vunpack.c.h.b16 %v2582
        %v2772 = vunpack.c.h.b16 %v2583
        %v2773 = vunpack.c.h.b16 %v2584
        %v2774 = vunpack.c.h.b16 %v2585
        %v2775 = vunpack.c.l.b16 %v2586
        %v2776 = vunpack.c.l.b16 %v2587
        %v2777 = vunpack.c.l.b16 %v2588
        %v2778 = vunpack.c.l.b16 %v2589
        %v2779 = vunpack.c.l.b16 %v2590
        %v2780 = vunpack.c.l.b16 %v2591
        %v2781 = vunpack.c.l.b16 %v2592
        %v2782 = vunpack.c.h.b16 %v2586
        %v2783 = vunpack.c.h.b16 %v2587
        %v2784 = vunpack.c.h.b16 %v2588
        %v2785 = vunpack.c.h.b16 %v2589
        %v2786 = vunpack.c.h.b16 %v2590
        %v2787 = vunpack.c.h.b16 %v2591
        %v2788 = vunpack.c.h.b16 %v2592
        %v2789 = vunpack.c.l.b16 %v2593
        %v2790 = vunpack.c.l.b16 %v2594
        %v2791 = vunpack.c.l.b16 %v2595
        %v2792 = vunpack.c.l.b16 %v2596
        %v2793 = vunpack.c.l.b16 %v2597
        %v2794 = vunpack.c.l.b16 %v2598
        %v2795 = vunpack.c.l.b16 %v2599
        %v2796 = vunpack.c.h.b16 %v2593
        %v2797 = vunpack.c.h.b16 %v2594
        %v2798 = vunpack.c.h.b16 %v2595
        %v2799 = vunpack.c.h.b16 %v2596
        %v2800 = vunpack.c.h.b16 %v2597
        %v2801 = vunpack.c.h.b16 %v2598
        %v2802 = vunpack.c.h.b16 %v2599
        %v2803 = vunpack.c.l.b16 %v2600
        %v2804 = vunpack.c.l.b16 %v2601
        %v2805 = vunpack.c.l.b16 %v2602
        %v2806 = vunpack.c.l.b16 %v2603
        %v2807 = vunpack.c.l.b16 %v2604
        %v2808 = vunpack.c.l.b16 %v2605
        %v2809 = vunpack.c.l.b16 %v2606
        %v2810 = vunpack.c.h.b16 %v2600
        %v2811 = vunpack.c.h.b16 %v2601
        %v2812 = vunpack.c.h.b16 %v2602
        %v2813 = vunpack.c.h.b16 %v2603
        %v2814 = vunpack.c.h.b16 %v2604
        %v2815 = vunpack.c.h.b16 %v2605
        %v2816 = vunpack.c.h.b16 %v2606
        %v2817 = vpack.c.b16 %v2678, %v2677
        %v2818 = vpack.c.b16 %v2680, %v2679
        %v2819 = vpack.c.b16 %v2682, %v2681
        %v2820 = vpack.c.b16 %v2683, %v2683
        %v2821 = vpack.c.b16 %v2685, %v2684
        %v2822 = vpack.c.b16 %v2687, %v2686
        %v2823 = vpack.c.b16 %v2689, %v2688
        %v2824 = vpack.c.b16 %v2690, %v2690
        %v2825 = vpack.c.b16 %v2692, %v2691
        %v2826 = vpack.c.b16 %v2694, %v2693
        %v2827 = vpack.c.b16 %v2696, %v2695
        %v2828 = vpack.c.b16 %v2697, %v2697
        %v2829 = vpack.c.b16 %v2699, %v2698
        %v2830 = vpack.c.b16 %v2701, %v2700
        %v2831 = vpack.c.b16 %v2703, %v2702
        %v2832 = vpack.c.b16 %v2704, %v2704
        %v2833 = vpack.c.b16 %v2706, %v2705
        %v2834 = vpack.c.b16 %v2708, %v2707
        %v2835 = vpack.c.b16 %v2710, %v2709
        %v2836 = vpack.c.b16 %v2711, %v2711
        %v2837 = vpack.c.b16 %v2713, %v2712
        %v2838 = vpack.c.b16 %v2715, %v2714
        %v2839 = vpack.c.b16 %v2717, %v2716
        %v2840 = vpack.c.b16 %v2718, %v2718
        %v2841 = vpack.c.b16 %v2720, %v2719
        %v2842 = vpack.c.b16 %v2722, %v2721
        %v2843 = vpack.c.b16 %v2724, %v2723
        %v2844 = vpack.c.b16 %v2725, %v2725
        %v2845 = vpack.c.b16 %v2727, %v2726
        %v2846 = vpack.c.b16 %v2729, %v2728
        %v2847 = vpack.c.b16 %v2731, %v2730
        %v2848 = vpack.c.b16 %v2732, %v2732
        %v2849 = vpack.c.b16 %v2734, %v2733
        %v2850 = vpack.c.b16 %v2736, %v2735
        %v2851 = vpack.c.b16 %v2738, %v2737
        %v2852 = vpack.c.b16 %v2739, %v2739
        %v2853 = vpack.c.b16 %v2741, %v2740
        %v2854 = vpack.c.b16 %v2743, %v2742
        %v2855 = vpack.c.b16 %v2745, %v2744
        %v2856 = vpack.c.b16 %v2746, %v2746
        %v2857 = vpack.c.b16 %v2748, %v2747
        %v2858 = vpack.c.b16 %v2750, %v2749
        %v2859 = vpack.c.b16 %v2752, %v2751
        %v2860 = vpack.c.b16 %v2753, %v2753
        %v2861 = vpack.c.b16 %v2755, %v2754
        %v2862 = vpack.c.b16 %v2757, %v2756
        %v2863 = vpack.c.b16 %v2759, %v2758
        %v2864 = vpack.c.b16 %v2760, %v2760
        %v2865 = vpack.c.b16 %v2762, %v2761
        %v2866 = vpack.c.b16 %v2764, %v2763
        %v2867 = vpack.c.b16 %v2766, %v2765
        %v2868 = vpack.c.b16 %v2767, %v2767
        %v2869 = vpack.c.b16 %v2769, %v2768
        %v2870 = vpack.c.b16 %v2771, %v2770
        %v2871 = vpack.c.b16 %v2773, %v2772
        %v2872 = vpack.c.b16 %v2774, %v2774
        %v2873 = vpack.c.b16 %v2776, %v2775
        %v2874 = vpack.c.b16 %v2778, %v2777
        %v2875 = vpack.c.b16 %v2780, %v2779
        %v2876 = vpack.c.b16 %v2781, %v2781
        %v2877 = vpack.c.b16 %v2783, %v2782
        %v2878 = vpack.c.b16 %v2785, %v2784
        %v2879 = vpack.c.b16 %v2787, %v2786
        %v2880 = vpack.c.b16 %v2788, %v2788
        %v2881 = vpack.c.b16 %v2790, %v2789
        %v2882 = vpack.c.b16 %v2792, %v2791
        %v2883 = vpack.c.b16 %v2794, %v2793
        %v2884 = vpack.c.b16 %v2795, %v2795
        %v2885 = vpack.c.b16 %v2797, %v2796
        %v2886 = vpack.c.b16 %v2799, %v2798
        %v2887 = vpack.c.b16 %v2801, %v2800
        %v2888 = vpack.c.b16 %v2802, %v2802
        %v2889 = vpack.c.b16 %v2804, %v2803
        %v2890 = vpack.c.b16 %v2806, %v2805
        %v2891 = vpack.c.b16 %v2808, %v2807
        %v2892 = vpack.c.b16 %v2809, %v2809
        %v2893 = vpack.c.b16 %v2811, %v2810
        %v2894 = vpack.c.b16 %v2813, %v2812
        %v2895 = vpack.c.b16 %v2815, %v2814
        %v2896 = vpack.c.b16 %v2816, %v2816
        %2977 = vst [vmem:[%s351] sm:$0xff] %v2817
        %2978 = vst [vmem:[%s351 + $0x8] sm:$0xff] %v2818
        %2979 = vst [vmem:[%s351 + $0x10] sm:$0xff] %v2819
        %vm2980 = vcmask 125952
        %2981 = vst.msk [vmem:[%s351 + $0x18] sm:$0xf] %vm2980, %v2820
        %2982 = vst [vmem:[%s351 + $0x1c] sm:$0xff] %v2821
        %2983 = vst [vmem:[%s351 + $0x24] sm:$0xff] %v2822
        %2984 = vst [vmem:[%s351 + $0x2c] sm:$0xff] %v2823
        %2985 = vst.msk [vmem:[%s351 + $0x34] sm:$0xf] %vm2980, %v2824
        %2986 = vst [vmem:[%s351 + $0x38] sm:$0xff] %v2825
        %2987 = vst [vmem:[%s351 + $0x40] sm:$0xff] %v2826
        %2988 = vst [vmem:[%s351 + $0x48] sm:$0xff] %v2827
        %2989 = vst.msk [vmem:[%s351 + $0x50] sm:$0xf] %vm2980, %v2828
        %2990 = vst [vmem:[%s351 + $0x54] sm:$0xff] %v2829
        %2991 = vst [vmem:[%s351 + $0x5c] sm:$0xff] %v2830
        %2992 = vst [vmem:[%s351 + $0x64] sm:$0xff] %v2831
        %2993 = vst.msk [vmem:[%s351 + $0x6c] sm:$0xf] %vm2980, %v2832
        %2994 = vst [vmem:[%s351 + $0x70] sm:$0xff] %v2833
        %2995 = vst [vmem:[%s351 + $0x78] sm:$0xff] %v2834
        %2996 = vst [vmem:[%s351 + $0x80] sm:$0xff] %v2835
        %2997 = vst.msk [vmem:[%s351 + $0x88] sm:$0xf] %vm2980, %v2836
        %2998 = vst [vmem:[%s351 + $0x8c] sm:$0xff] %v2837
        %2999 = vst [vmem:[%s351 + $0x94] sm:$0xff] %v2838
        %3000 = vst [vmem:[%s351 + $0x9c] sm:$0xff] %v2839
        %3001 = vst.msk [vmem:[%s351 + $0xa4] sm:$0xf] %vm2980, %v2840
        %3002 = vst [vmem:[%s351 + $0xa8] sm:$0xff] %v2841
        %3003 = vst [vmem:[%s351 + $0xb0] sm:$0xff] %v2842
        %3004 = vst [vmem:[%s351 + $0xb8] sm:$0xff] %v2843
        %3005 = vst.msk [vmem:[%s351 + $0xc0] sm:$0xf] %vm2980, %v2844
        %3006 = vst [vmem:[%s351 + $0xc4] sm:$0xff] %v2845
        %3007 = vst [vmem:[%s351 + $0xcc] sm:$0xff] %v2846
        %3008 = vst [vmem:[%s351 + $0xd4] sm:$0xff] %v2847
        %3009 = vst.msk [vmem:[%s351 + $0xdc] sm:$0xf] %vm2980, %v2848
        %3010 = vst [vmem:[%s351 + $0xe0] sm:$0xff] %v2849
        %3011 = vst [vmem:[%s351 + $0xe8] sm:$0xff] %v2850
        %3012 = vst [vmem:[%s351 + $0xf0] sm:$0xff] %v2851
        %3013 = vst.msk [vmem:[%s351 + $0xf8] sm:$0xf] %vm2980, %v2852
        %3014 = vst [vmem:[%s351 + $0xfc] sm:$0xff] %v2853
        %3015 = vst [vmem:[%s351 + $0x104] sm:$0xff] %v2854
        %3016 = vst [vmem:[%s351 + $0x10c] sm:$0xff] %v2855
        %3017 = vst.msk [vmem:[%s351 + $0x114] sm:$0xf] %vm2980, %v2856
        %3018 = vst [vmem:[%s351 + $0x118] sm:$0xff] %v2857
        %3019 = vst [vmem:[%s351 + $0x120] sm:$0xff] %v2858
        %3020 = vst [vmem:[%s351 + $0x128] sm:$0xff] %v2859
        %3021 = vst.msk [vmem:[%s351 + $0x130] sm:$0xf] %vm2980, %v2860
        %3022 = vst [vmem:[%s351 + $0x134] sm:$0xff] %v2861
        %3023 = vst [vmem:[%s351 + $0x13c] sm:$0xff] %v2862
        %3024 = vst [vmem:[%s351 + $0x144] sm:$0xff] %v2863
        %3025 = vst.msk [vmem:[%s351 + $0x14c] sm:$0xf] %vm2980, %v2864
        %3026 = vst [vmem:[%s351 + $0x150] sm:$0xff] %v2865
        %3027 = vst [vmem:[%s351 + $0x158] sm:$0xff] %v2866
        %3028 = vst [vmem:[%s351 + $0x160] sm:$0xff] %v2867
        %3029 = vst.msk [vmem:[%s351 + $0x168] sm:$0xf] %vm2980, %v2868
        %3030 = vst [vmem:[%s351 + $0x16c] sm:$0xff] %v2869
        %3031 = vst [vmem:[%s351 + $0x174] sm:$0xff] %v2870
        %3032 = vst [vmem:[%s351 + $0x17c] sm:$0xff] %v2871
        %3033 = vst.msk [vmem:[%s351 + $0x184] sm:$0xf] %vm2980, %v2872
        %3034 = vst [vmem:[%s351 + $0x188] sm:$0xff] %v2873
        %3035 = vst [vmem:[%s351 + $0x190] sm:$0xff] %v2874
        %3036 = vst [vmem:[%s351 + $0x198] sm:$0xff] %v2875
        %3037 = vst.msk [vmem:[%s351 + $0x1a0] sm:$0xf] %vm2980, %v2876
        %3038 = vst [vmem:[%s351 + $0x1a4] sm:$0xff] %v2877
        %3039 = vst [vmem:[%s351 + $0x1ac] sm:$0xff] %v2878
        %3040 = vst [vmem:[%s351 + $0x1b4] sm:$0xff] %v2879
        %3041 = vst.msk [vmem:[%s351 + $0x1bc] sm:$0xf] %vm2980, %v2880
        %3042 = vst [vmem:[%s351 + $0x1c0] sm:$0xff] %v2881
        %3043 = vst [vmem:[%s351 + $0x1c8] sm:$0xff] %v2882
        %3044 = vst [vmem:[%s351 + $0x1d0] sm:$0xff] %v2883
        %3045 = vst.msk [vmem:[%s351 + $0x1d8] sm:$0xf] %vm2980, %v2884
        %3046 = vst [vmem:[%s351 + $0x1dc] sm:$0xff] %v2885
        %3047 = vst [vmem:[%s351 + $0x1e4] sm:$0xff] %v2886
        %3048 = vst [vmem:[%s351 + $0x1ec] sm:$0xff] %v2887
        %3049 = vst.msk [vmem:[%s351 + $0x1f4] sm:$0xf] %vm2980, %v2888
        %3050 = vst [vmem:[%s351 + $0x1f8] sm:$0xff] %v2889
        %3051 = vst [vmem:[%s351 + $0x200] sm:$0xff] %v2890
        %3052 = vst [vmem:[%s351 + $0x208] sm:$0xff] %v2891
        %3053 = vst.msk [vmem:[%s351 + $0x210] sm:$0xf] %vm2980, %v2892
        %3054 = vst [vmem:[%s351 + $0x214] sm:$0xff] %v2893
        %3055 = vst [vmem:[%s351 + $0x21c] sm:$0xff] %v2894
        %3056 = vst [vmem:[%s351 + $0x224] sm:$0xff] %v2895
        %3057 = vst.msk [vmem:[%s351 + $0x22c] sm:$0xf] %vm2980, %v2896
        %s3058 = smul.u32 20, %s21
        %p3059 = scmp.lt.s32.totalorder %s3058, 39
        %s3060 = scalar_select %p3059, %s3058, 39
        %s3061 = smul.addr %s3060, 7
        %s3062 = smul.addr %s3061, 4
        %s3063 = scalar_lea.vmem %s9, %s3062
        // Predicated region
        $region61: #{generator_forward.1} parent=55 // pred_check
          %p3064 = pneg %p233
        $region62: #{generator_forward.1} parent=55 // pred_check_branch
          %3066 = sbr.rel (%p3064) target = $region64
        $region63: #{generator_forward.1} parent=55 // pred_region
          %s3067 = smul.u32 20, %s21
        $region64: #{generator_forward.1} parent=55 // pred_fallthru
          _
      $region56: #{generator_forward.1} parent=5 // pred_fallthru
        _
      %p3068 = scmp.le.s32.totalorder 2, %s16
      // Predicated region
      $region65: #{generator_forward.1} parent=5 // pred_check
        %p3069 = pneg %p3068
      $region66: #{generator_forward.1} parent=5 // pred_check_branch
        %3071 = sbr.rel (%p3069) target = $region68
      $region67: #{generator_forward.1} parent=5 // pred_region
        %s3072 = ssub.s32 %s16, 2
        // Predicated region
        $region69: #{generator_forward.1} parent=67 // pred_check
          %p3073 = pneg %p239
        $region70: #{generator_forward.1} parent=67 // pred_check_branch
          %3075 = sbr.rel (%p3073) target = $region72
        $region71: #{generator_forward.1} parent=67 // pred_region
          %s3076 = smul.u32 20, %s22
          %p3077 = scmp.lt.s32.totalorder %s3076, 39
          %s3078 = scalar_select %p3077, %s3076, 39
          %s3079 = smul.addr %s3078, 7
          %s3080 = smul.addr %s3079, 4
          %s3081 = scalar_lea.vmem %s9, %s3080
        $region72: #{generator_forward.1} parent=67 // pred_fallthru
          _
      $region68: #{generator_forward.1} parent=5 // pred_fallthru
        _
    $region6: #{generator_forward.1} parent=1 // loop_footer
      %s20 = sadd.s32 1, %s16
    $region7: #{generator_forward.1} parent=1 // loop_footer_branch
      %15 = sbr.rel target = $region3
    $region8: #{generator_forward.1} parent=1 // loop_exit
      _
    %3082 = vsyncpa [#allocation4], 1
    %s3083 = scalar_lea.sflag [#allocation4], 1
    %3084 = vsyncpa %s3083, 1

</llo_original>
